<compile_context>
chip_gen: v7x
topology: tpu7x:2x2x1
jax: 0.10.0
libtpu: 0.0.40
codegen_flags: <defaults>
</compile_context>

<pallas_src>
import jax
import jax.numpy as jnp
import numpy as np
from jax.experimental import pallas as pl
from jax.experimental.pallas import tpu as pltpu

# Tap order matches the OIHW -> (O, kh, kw, I) weight flattening below.
_TAPS = tuple((dh, dw) for dh in (-1, 0, 1) for dw in (-1, 0, 1))


def _make_kernel(Cin, Ch, Cout, H, W, B, learned_shortcut, use_im2col):
    P = H * W
    L = B * P      # folded lane width (B images side by side)

    def kernel(*refs):
        x_ref, w0_ref, b0_ref, w1_ref, b1_ref, m_ref = refs[:6]
        k = 6
        ws_ref = None
        if learned_shortcut:
            ws_ref = refs[k]; k += 1
        o_ref = refs[k]; k += 1
        col_ref = refs[k] if use_im2col else None

        masks = m_ref[...]                          # (9, L) f32 boundary masks

        # Fold the B images of this block into the lane dimension:
        # x_fold[c, b*P + p] = x[b, c, p].  Each piece is P lanes (a multiple
        # of 128), so the concatenation stays lane-aligned.
        if B == 1:
            x_fold = x_ref[0]                       # (Cin, L) f32
        else:
            x_fold = jnp.concatenate([x_ref[b] for b in range(B)], axis=1)

        def conv3x3(v, C, w_ref, b_ref):
            """3x3 'same' conv of v (C, L) f32 -> (Co, L) f32 (f32 accum)."""
            taps = []
            for t, (dh, dw) in enumerate(_TAPS):
                s = dh * W + dw
                if s == 0:
                    tap = v
                else:
                    # roll + mask: rolled-in wrap / cross-image lanes are all
                    # at positions where (h+dh, w+dw) leaves the image, i.e.
                    # exactly the masked positions -> no halo buffer needed.
                    tap = pltpu.roll(v, shift=(-s) % L, axis=1)
                    tap = tap * masks[t:t + 1, :]   # f32 multiply (v5e-safe)
                taps.append(tap)
            if use_im2col:
                # Tiny-C path: materialize the (9C, L) column matrix in the
                # shared scratch and do ONE MXU matmul with K = 9C.
                # (Note: for C not a multiple of the bf16 sublane pack the
                # segment starts fall mid-vreg; acceptable at these sizes.)
                for t in range(9):
                    col_ref[t * C:(t + 1) * C, :] = taps[t].astype(jnp.bfloat16)
                acc = jnp.dot(w_ref[...], col_ref[0:9 * C, :],
                              preferred_element_type=jnp.float32)
            else:
                # Production-C path: no materialized im2col; nine accumulating
                # tap matmuls (relieves the vector-store slot, removes the
                # large col scratch -> fits v7x's 64 MiB VMEM).
                acc = jnp.dot(w_ref[:, 0:C], taps[0].astype(jnp.bfloat16),
                              preferred_element_type=jnp.float32)
                for t in range(1, 9):
                    acc = acc + jnp.dot(w_ref[:, t * C:(t + 1) * C],
                                        taps[t].astype(jnp.bfloat16),
                                        preferred_element_type=jnp.float32)
            return acc + b_ref[...]

        # ---- shortcut (f32; identity path skips the matmul statically) ----
        if learned_shortcut:
            x_s = jnp.dot(ws_ref[...], x_fold,
                          preferred_element_type=jnp.float32)   # (Cout, L)
        else:
            x_s = x_fold                                        # exact f32

        # ---- conv_0: leaky_relu(x) -> 3x3 conv (AdaFM-modulated W0) ----
        dx0 = jnp.where(x_fold >= 0, x_fold, 0.2 * x_fold)
        h0 = conv3x3(dx0, Cin, w0_ref, b0_ref)                  # (Ch, L) f32

        # ---- conv_1: leaky_relu -> 3x3 conv (AdaFM-modulated W1) ----
        dx1 = jnp.where(h0 >= 0, h0, 0.2 * h0)
        y = conv3x3(dx1, Ch, w1_ref, b1_ref)                    # (Cout, L) f32

        # ---- residual combine; per-image lane slices are 128-aligned ----
        for b in range(B):
            lo, hi = b * P, (b + 1) * P
            o_ref[b] = x_s[:, lo:hi] + 0.1 * y[:, lo:hi]

    return kernel


def _round_up(a, b):
    return (a + b - 1) // b * b


def _pick_batch_block(N, Cmax, P):
    """Images per grid step: keep >=2 grid steps, bound the col scratch."""
    if N <= 1:
        return 1
    B = max(1, N // 2)
    budget = 8 * 1024 * 1024          # rough cap for the shared col scratch
    while B > 1 and 9 * Cmax * B * P * 2 > budget:
        B -= 1
    return B


def _vmem_limit_bytes():
    cap = 64 * 1024 * 1024            # conservative fallback (v7x per-core)
    try:
        info = pltpu.get_tpu_info()
        cap = int(getattr(info, "vmem_capacity_bytes", cap))
    except Exception:
        pass
    # ~100 MiB on 128-MiB parts (v5e/v6e), ~56 MiB on 64-MiB parts (v7x).
    return int(min(max(cap - 8 * 1024 * 1024, 32 * 1024 * 1024),
                   100 * 1024 * 1024))


def _const_spec(shape):
    """BlockSpec for a grid-invariant operand; single-buffered if supported."""
    imap = lambda n: (0,) * len(shape)
    try:
        return pl.BlockSpec(shape, imap, pipeline_mode=pl.Buffered(1))
    except Exception:
        return pl.BlockSpec(shape, imap)


def resnet_block_style_svd(x_nchw,
                           conv0_w, conv0_b, gamma0, beta0, adafm_b0,
                           conv1_w, conv1_b, gamma1, beta1, adafm_b1,
                           conv_s_w=None):
    """ResnetBlock_style_SVD.forward (task_id=-1, UPDATE_GLOBAL=False).

    x_nchw:   (N, fin, H, W) f32
    conv0_w:  (fh, fin, 3, 3) OIHW, conv0_b: (fh,), gamma0/beta0: (fh, fin)
    conv1_w:  (fout, fh, 3, 3) OIHW, conv1_b: (fout,), gamma1/beta1: (fout, fh)
    conv_s_w: (fout, fin, 1, 1) OIHW or None (identity shortcut when fin==fout)
    Returns   (N, fout, H, W) f32.
    """
    N, Cin, H, W = x_nchw.shape
    Ch = conv0_w.shape[0]
    Cout = conv1_w.shape[0]
    P = H * W
    learned = conv_s_w is not None
    Cmax = max(Cin, Ch)
    use_im2col = Cmax < 64            # tiny C: fused K=9C; big C: accumulate
    B = _pick_batch_block(N, Cmax, P)
    Npad = _round_up(N, B)
    L = B * P

    # --- tiny parameter-space glue: AdaFM modulation + bias sums (f32) ---
    W0 = gamma0[:, :, None, None] * conv0_w + beta0[:, :, None, None]
    W1 = gamma1[:, :, None, None] * conv1_w + beta1[:, :, None, None]
    b0e = (conv0_b + adafm_b0).astype(jnp.float32)
    b1e = (conv1_b + adafm_b1).astype(jnp.float32)

    # OIHW -> (O, kh, kw, I) -> (O, 9*I); rows match the kernel's tap order.
    w0_flat = jnp.transpose(W0, (0, 2, 3, 1)).reshape(Ch, 9 * Cin).astype(jnp.bfloat16)
    w1_flat = jnp.transpose(W1, (0, 2, 3, 1)).reshape(Cout, 9 * Ch).astype(jnp.bfloat16)
    b0_col = b0e.reshape(Ch, 1)
    b1_col = b1e.reshape(Cout, 1)

    # Per-tap boundary masks on the folded spatial axis:
    # masks[t, b*P + h*W + w] = 1 iff (h+dh, w+dw) stays inside the image.
    h_idx = jnp.arange(P, dtype=jnp.int32) // W
    w_idx = jnp.arange(P, dtype=jnp.int32) % W
    rows = []
    for dh, dw in _TAPS:
        valid = jnp.ones((P,), jnp.bool_)
        if dh == -1:
            valid = valid & (h_idx != 0)
        if dh == 1:
            valid = valid & (h_idx != H - 1)
        if dw == -1:
            valid = valid & (w_idx != 0)
        if dw == 1:
            valid = valid & (w_idx != W - 1)
        rows.append(valid)
    masks = jnp.tile(jnp.stack(rows).astype(jnp.float32), (1, B))    # (9, L)

    # Pure reshape (no boundary transpose): channel-major, lane = H*W.
    x_flat = x_nchw.reshape(N, Cin, P)
    if Npad != N:
        x_flat = jnp.pad(x_flat, ((0, Npad - N), (0, 0), (0, 0)))

    kernel = _make_kernel(Cin, Ch, Cout, H, W, B, learned, use_im2col)

    in_specs = [
        pl.BlockSpec((B, Cin, P), lambda n: (n, 0, 0)),
        _const_spec((Ch, 9 * Cin)),
        _const_spec((Ch, 1)),
        _const_spec((Cout, 9 * Ch)),
        _const_spec((Cout, 1)),
        _const_spec((9, L)),
    ]
    args = [x_flat, w0_flat, b0_col, w1_flat, b1_col, masks]
    if learned:
        in_specs.append(_const_spec((Cout, Cin)))
        args.append(conv_s_w[:, :, 0, 0].astype(jnp.float32))   # f32 shortcut W

    scratch = []
    if use_im2col:
        # Shared by conv_0 and conv_1 (strictly sequential), so peak scratch
        # is max(9*Cin, 9*Ch) * L bf16 -- not the sum.
        scratch.append(pltpu.VMEM((9 * Cmax, L), jnp.bfloat16))

    # TODO(synk): for production image sizes add a second "parallel" grid axis
    # over H strips (1-row halo) so per-step VMEM stays bounded on v7x (64 MiB)
    # and both TensorCores get work even at batch 1; not needed at 16x16.
    out = pl.pallas_call(
        kernel,
        out_shape=jax.ShapeDtypeStruct((Npad, Cout, P), jnp.float32),
        grid_spec=pltpu.PrefetchScalarGridSpec(
            num_scalar_prefetch=0,
            grid=(Npad // B,),
            in_specs=in_specs,
            out_specs=pl.BlockSpec((B, Cout, P), lambda n: (n, 0, 0)),
            scratch_shapes=scratch),
        compiler_params=pltpu.CompilerParams(
            dimension_semantics=("parallel",),
            vmem_limit_bytes=_vmem_limit_bytes()),
    )(*args)

    return out[:N].reshape(N, Cout, H, W)


# ----------------------------- pure-JAX reference -----------------------------
def _lrelu(v):
    return jnp.where(v >= 0, v, 0.2 * v)


def _ref_forward(x, conv0_w, conv0_b, gamma0, beta0, adafm_b0,
                 conv1_w, conv1_b, gamma1, beta1, adafm_b1, conv_s_w=None):
    dn = ("NCHW", "OIHW", "NCHW")
    W0 = gamma0[:, :, None, None] * conv0_w + beta0[:, :, None, None]
    W1 = gamma1[:, :, None, None] * conv1_w + beta1[:, :, None, None]
    b0e = conv0_b + adafm_b0
    b1e = conv1_b + adafm_b1
    if conv_s_w is not None:
        x_s = jax.lax.conv_general_dilated(x, conv_s_w, (1, 1), "VALID",
                                           dimension_numbers=dn)
    else:
        x_s = x
    dx = _lrelu(x)
    dx = jax.lax.conv_general_dilated(dx, W0, (1, 1), ((1, 1), (1, 1)),
                                      dimension_numbers=dn) + b0e[None, :, None, None]
    dx = _lrelu(dx)
    dx = jax.lax.conv_general_dilated(dx, W1, (1, 1), ((1, 1), (1, 1)),
                                      dimension_numbers=dn) + b1e[None, :, None, None]
    return x_s + 0.1 * dx


def _make_params(key, fin, fout):
    fh = min(fin, fout)
    ks = jax.random.split(key, 11)
    conv0_w = 0.1 * jax.random.normal(ks[0], (fh, fin, 3, 3), jnp.float32)
    conv0_b = 0.1 * jax.random.normal(ks[1], (fh,), jnp.float32)
    conv1_w = 0.1 * jax.random.normal(ks[2], (fout, fh, 3, 3), jnp.float32)
    conv1_b = 0.1 * jax.random.normal(ks[3], (fout,), jnp.float32)
    gamma0 = 1.0 + 0.1 * jax.random.normal(ks[4], (fh, fin), jnp.float32)
    beta0 = 0.1 * jax.random.normal(ks[5], (fh, fin), jnp.float32)
    adafm_b0 = 0.1 * jax.random.normal(ks[6], (fh,), jnp.float32)
    gamma1 = 1.0 + 0.1 * jax.random.normal(ks[7], (fout, fh), jnp.float32)
    beta1 = 0.1 * jax.random.normal(ks[8], (fout, fh), jnp.float32)
    adafm_b1 = 0.1 * jax.random.normal(ks[9], (fout,), jnp.float32)
    conv_s_w = (0.1 * jax.random.normal(ks[10], (fout, fin, 1, 1), jnp.float32)
                if fin != fout else None)
    return (conv0_w, conv0_b, gamma0, beta0, adafm_b0,
            conv1_w, conv1_b, gamma1, beta1, adafm_b1, conv_s_w)


if __name__ == "__main__":
    # N=4 exercises the batch-folding path (B=2 images per grid step, grid=2).
    N, H, W = 4, 16, 16
    fwd = jax.jit(resnet_block_style_svd)
    key = jax.random.PRNGKey(0)
    # (fin=4, fout=8): learned 1x1 shortcut.  (fin=8, fout=8): identity shortcut.
    for (fin, fout), cfg_key in zip([(4, 8), (8, 8)], jax.random.split(key, 2)):
        kx, kp = jax.random.split(cfg_key)
        x = jax.random.normal(kx, (N, fin, H, W), jnp.float32)
        params = _make_params(kp, fin, fout)
        out = jax.block_until_ready(fwd(x, *params))
        ref = _ref_forward(x, *params)
        np.testing.assert_allclose(np.asarray(out), np.asarray(ref),
                                   rtol=2e-2, atol=2e-2)
    print("KERNEL_OK")
</pallas_src>

<mosaic_0001>
module attributes {stable_mosaic.version = 11 : i64} {
  func.func @kernel(%arg0: i32, %arg1: memref<2x4x256xf32, #tpu.memory_space<vmem>>, %arg2: memref<4x36xbf16, #tpu.memory_space<vmem>>, %arg3: memref<4x1xf32, #tpu.memory_space<vmem>>, %arg4: memref<8x36xbf16, #tpu.memory_space<vmem>>, %arg5: memref<8x1xf32, #tpu.memory_space<vmem>>, %arg6: memref<9x512xf32, #tpu.memory_space<vmem>>, %arg7: memref<8x4xf32, #tpu.memory_space<vmem>>, %arg8: memref<2x8x256xf32, #tpu.memory_space<vmem>>, %arg9: memref<36x512xbf16, #tpu.memory_space<vmem>>) attributes {dimension_semantics = [#tpu.dimension_semantics<parallel>], iteration_bounds = array<i64: 2>, scalar_prefetch = 0 : i64, scratch_operands = 1 : i64, tpu.core_type = #tpu.core_type<tc>, window_params = [{transform_indices = @transform_0, window_bounds = array<i64: 2, 4, 256>}, {pipeline_mode = #tpu.pipeline_mode<synchronous>, transform_indices = @transform_1, window_bounds = array<i64: 4, 36>}, {pipeline_mode = #tpu.pipeline_mode<synchronous>, transform_indices = @transform_2, window_bounds = array<i64: 4, 1>}, {pipeline_mode = #tpu.pipeline_mode<synchronous>, transform_indices = @transform_3, window_bounds = array<i64: 8, 36>}, {pipeline_mode = #tpu.pipeline_mode<synchronous>, transform_indices = @transform_4, window_bounds = array<i64: 8, 1>}, {pipeline_mode = #tpu.pipeline_mode<synchronous>, transform_indices = @transform_5, window_bounds = array<i64: 9, 512>}, {pipeline_mode = #tpu.pipeline_mode<synchronous>, transform_indices = @transform_6, window_bounds = array<i64: 8, 4>}, {transform_indices = @transform_7, window_bounds = array<i64: 2, 8, 256>}]} {
    %c0 = arith.constant 0 : index
    %c0_0 = arith.constant 0 : index
    %0 = vector.load %arg6[%c0, %c0_0] : memref<9x512xf32, #tpu.memory_space<vmem>>, vector<9x512xf32>
    %c0_1 = arith.constant 0 : index
    %c0_2 = arith.constant 0 : index
    %c0_3 = arith.constant 0 : index
    %1 = vector.load %arg1[%c0_1, %c0_2, %c0_3] : memref<2x4x256xf32, #tpu.memory_space<vmem>>, vector<1x4x256xf32>
    %2 = vector.shape_cast %1 : vector<1x4x256xf32> to vector<4x256xf32>
    %c1 = arith.constant 1 : index
    %c0_4 = arith.constant 0 : index
    %c0_5 = arith.constant 0 : index
    %3 = vector.load %arg1[%c1, %c0_4, %c0_5] : memref<2x4x256xf32, #tpu.memory_space<vmem>>, vector<1x4x256xf32>
    %4 = vector.shape_cast %3 : vector<1x4x256xf32> to vector<4x256xf32>
    %5 = tpu.concatenate %2, %4 in 1 : vector<4x256xf32>, vector<4x256xf32> -> vector<4x512xf32>
    %c0_6 = arith.constant 0 : index
    %c0_7 = arith.constant 0 : index
    %6 = vector.load %arg7[%c0_6, %c0_7] : memref<8x4xf32, #tpu.memory_space<vmem>>, vector<8x4xf32>
    %cst = arith.constant dense<0.000000e+00> : vector<8x512xf32>
    %7 = tpu.matmul %6, %5, %cst {dimension_numbers = #tpu.dot_dimension_numbers<[1], [0], [0], [1], [0, 0, 1, 1], [], []>} : vector<8x4xf32>, vector<4x512xf32>, vector<8x512xf32> -> vector<8x512xf32>
    %cst_8 = arith.constant 0.000000e+00 : f32
    %8 = vector.broadcast %cst_8 : f32 to vector<4x512xf32>
    %9 = arith.cmpf oge, %5, %8 : vector<4x512xf32>
    %cst_9 = arith.constant 2.000000e-01 : f32
    %10 = vector.broadcast %cst_9 : f32 to vector<4x512xf32>
    %11 = arith.mulf %10, %5 : vector<4x512xf32>
    %12 = arith.select %9, %5, %11 : vector<4x512xi1>, vector<4x512xf32>
    %c17_i32 = arith.constant 17 : i32
    %13 = tpu.dynamic_rotate %12 by %c17_i32 dim 1 : vector<4x512xf32>, i32 -> vector<4x512xf32>
    %14 = vector.extract_strided_slice %0 {offsets = [0, 0], sizes = [1, 512], strides = [1, 1]} : vector<9x512xf32> to vector<1x512xf32>
    %15 = vector.broadcast %14 : vector<1x512xf32> to vector<4x512xf32>
    %16 = arith.mulf %13, %15 : vector<4x512xf32>
    %c16_i32 = arith.constant 16 : i32
    %17 = tpu.dynamic_rotate %12 by %c16_i32 dim 1 : vector<4x512xf32>, i32 -> vector<4x512xf32>
    %18 = vector.extract_strided_slice %0 {offsets = [1, 0], sizes = [1, 512], strides = [1, 1]} : vector<9x512xf32> to vector<1x512xf32>
    %19 = vector.broadcast %18 : vector<1x512xf32> to vector<4x512xf32>
    %20 = arith.mulf %17, %19 : vector<4x512xf32>
    %c15_i32 = arith.constant 15 : i32
    %21 = tpu.dynamic_rotate %12 by %c15_i32 dim 1 : vector<4x512xf32>, i32 -> vector<4x512xf32>
    %22 = vector.extract_strided_slice %0 {offsets = [2, 0], sizes = [1, 512], strides = [1, 1]} : vector<9x512xf32> to vector<1x512xf32>
    %23 = vector.broadcast %22 : vector<1x512xf32> to vector<4x512xf32>
    %24 = arith.mulf %21, %23 : vector<4x512xf32>
    %c1_i32 = arith.constant 1 : i32
    %25 = tpu.dynamic_rotate %12 by %c1_i32 dim 1 : vector<4x512xf32>, i32 -> vector<4x512xf32>
    %26 = vector.extract_strided_slice %0 {offsets = [3, 0], sizes = [1, 512], strides = [1, 1]} : vector<9x512xf32> to vector<1x512xf32>
    %27 = vector.broadcast %26 : vector<1x512xf32> to vector<4x512xf32>
    %28 = arith.mulf %25, %27 : vector<4x512xf32>
    %c511_i32 = arith.constant 511 : i32
    %29 = tpu.dynamic_rotate %12 by %c511_i32 dim 1 : vector<4x512xf32>, i32 -> vector<4x512xf32>
    %30 = vector.extract_strided_slice %0 {offsets = [5, 0], sizes = [1, 512], strides = [1, 1]} : vector<9x512xf32> to vector<1x512xf32>
    %31 = vector.broadcast %30 : vector<1x512xf32> to vector<4x512xf32>
    %32 = arith.mulf %29, %31 : vector<4x512xf32>
    %c497_i32 = arith.constant 497 : i32
    %33 = tpu.dynamic_rotate %12 by %c497_i32 dim 1 : vector<4x512xf32>, i32 -> vector<4x512xf32>
    %34 = vector.extract_strided_slice %0 {offsets = [6, 0], sizes = [1, 512], strides = [1, 1]} : vector<9x512xf32> to vector<1x512xf32>
    %35 = vector.broadcast %34 : vector<1x512xf32> to vector<4x512xf32>
    %36 = arith.mulf %33, %35 : vector<4x512xf32>
    %c496_i32 = arith.constant 496 : i32
    %37 = tpu.dynamic_rotate %12 by %c496_i32 dim 1 : vector<4x512xf32>, i32 -> vector<4x512xf32>
    %38 = vector.extract_strided_slice %0 {offsets = [7, 0], sizes = [1, 512], strides = [1, 1]} : vector<9x512xf32> to vector<1x512xf32>
    %39 = vector.broadcast %38 : vector<1x512xf32> to vector<4x512xf32>
    %40 = arith.mulf %37, %39 : vector<4x512xf32>
    %c495_i32 = arith.constant 495 : i32
    %41 = tpu.dynamic_rotate %12 by %c495_i32 dim 1 : vector<4x512xf32>, i32 -> vector<4x512xf32>
    %42 = vector.extract_strided_slice %0 {offsets = [8, 0], sizes = [1, 512], strides = [1, 1]} : vector<9x512xf32> to vector<1x512xf32>
    %43 = vector.broadcast %42 : vector<1x512xf32> to vector<4x512xf32>
    %44 = arith.mulf %41, %43 : vector<4x512xf32>
    %45 = arith.truncf %16 : vector<4x512xf32> to vector<4x512xbf16>
    %c0_10 = arith.constant 0 : index
    %c0_11 = arith.constant 0 : index
    %46 = vector.load %arg9[%c0_10, %c0_11] : memref<36x512xbf16, #tpu.memory_space<vmem>>, vector<4x512xbf16>
    tpu.vector_store %arg9[%c0_10, %c0_11], %45 {strides = array<i32>} : memref<36x512xbf16, #tpu.memory_space<vmem>>, vector<4x512xbf16>,
    %47 = arith.truncf %20 : vector<4x512xf32> to vector<4x512xbf16>
    %c4 = arith.constant 4 : index
    %c0_12 = arith.constant 0 : index
    %48 = vector.load %arg9[%c4, %c0_12] : memref<36x512xbf16, #tpu.memory_space<vmem>>, vector<4x512xbf16>
    tpu.vector_store %arg9[%c4, %c0_12], %47 {strides = array<i32>} : memref<36x512xbf16, #tpu.memory_space<vmem>>, vector<4x512xbf16>,
    %49 = arith.truncf %24 : vector<4x512xf32> to vector<4x512xbf16>
    %c8 = arith.constant 8 : index
    %c0_13 = arith.constant 0 : index
    %50 = vector.load %arg9[%c8, %c0_13] : memref<36x512xbf16, #tpu.memory_space<vmem>>, vector<4x512xbf16>
    tpu.vector_store %arg9[%c8, %c0_13], %49 {strides = array<i32>} : memref<36x512xbf16, #tpu.memory_space<vmem>>, vector<4x512xbf16>,
    %51 = arith.truncf %28 : vector<4x512xf32> to vector<4x512xbf16>
    %c12 = arith.constant 12 : index
    %c0_14 = arith.constant 0 : index
    %52 = vector.load %arg9[%c12, %c0_14] : memref<36x512xbf16, #tpu.memory_space<vmem>>, vector<4x512xbf16>
    tpu.vector_store %arg9[%c12, %c0_14], %51 {strides = array<i32>} : memref<36x512xbf16, #tpu.memory_space<vmem>>, vector<4x512xbf16>,
    %53 = arith.truncf %12 : vector<4x512xf32> to vector<4x512xbf16>
    %c16 = arith.constant 16 : index
    %c0_15 = arith.constant 0 : index
    %54 = vector.load %arg9[%c16, %c0_15] : memref<36x512xbf16, #tpu.memory_space<vmem>>, vector<4x512xbf16>
    tpu.vector_store %arg9[%c16, %c0_15], %53 {strides = array<i32>} : memref<36x512xbf16, #tpu.memory_space<vmem>>, vector<4x512xbf16>,
    %55 = arith.truncf %32 : vector<4x512xf32> to vector<4x512xbf16>
    %c20 = arith.constant 20 : index
    %c0_16 = arith.constant 0 : index
    %56 = vector.load %arg9[%c20, %c0_16] : memref<36x512xbf16, #tpu.memory_space<vmem>>, vector<4x512xbf16>
    tpu.vector_store %arg9[%c20, %c0_16], %55 {strides = array<i32>} : memref<36x512xbf16, #tpu.memory_space<vmem>>, vector<4x512xbf16>,
    %57 = arith.truncf %36 : vector<4x512xf32> to vector<4x512xbf16>
    %c24 = arith.constant 24 : index
    %c0_17 = arith.constant 0 : index
    %58 = vector.load %arg9[%c24, %c0_17] : memref<36x512xbf16, #tpu.memory_space<vmem>>, vector<4x512xbf16>
    tpu.vector_store %arg9[%c24, %c0_17], %57 {strides = array<i32>} : memref<36x512xbf16, #tpu.memory_space<vmem>>, vector<4x512xbf16>,
    %59 = arith.truncf %40 : vector<4x512xf32> to vector<4x512xbf16>
    %c28 = arith.constant 28 : index
    %c0_18 = arith.constant 0 : index
    %60 = vector.load %arg9[%c28, %c0_18] : memref<36x512xbf16, #tpu.memory_space<vmem>>, vector<4x512xbf16>
    tpu.vector_store %arg9[%c28, %c0_18], %59 {strides = array<i32>} : memref<36x512xbf16, #tpu.memory_space<vmem>>, vector<4x512xbf16>,
    %61 = arith.truncf %44 : vector<4x512xf32> to vector<4x512xbf16>
    %c32 = arith.constant 32 : index
    %c0_19 = arith.constant 0 : index
    %62 = vector.load %arg9[%c32, %c0_19] : memref<36x512xbf16, #tpu.memory_space<vmem>>, vector<4x512xbf16>
    tpu.vector_store %arg9[%c32, %c0_19], %61 {strides = array<i32>} : memref<36x512xbf16, #tpu.memory_space<vmem>>, vector<4x512xbf16>,
    %c0_20 = arith.constant 0 : index
    %c0_21 = arith.constant 0 : index
    %63 = vector.load %arg2[%c0_20, %c0_21] : memref<4x36xbf16, #tpu.memory_space<vmem>>, vector<4x36xbf16>
    %c0_22 = arith.constant 0 : index
    %c0_23 = arith.constant 0 : index
    %64 = vector.load %arg9[%c0_22, %c0_23] : memref<36x512xbf16, #tpu.memory_space<vmem>>, vector<36x512xbf16>
    %cst_24 = arith.constant dense<0.000000e+00> : vector<4x512xf32>
    %65 = tpu.matmul %63, %64, %cst_24 {dimension_numbers = #tpu.dot_dimension_numbers<[1], [0], [0], [1], [0, 0, 1, 1], [], []>} : vector<4x36xbf16>, vector<36x512xbf16>, vector<4x512xf32> -> vector<4x512xf32>
    %c0_25 = arith.constant 0 : index
    %c0_26 = arith.constant 0 : index
    %66 = vector.load %arg3[%c0_25, %c0_26] : memref<4x1xf32, #tpu.memory_space<vmem>>, vector<4x1xf32>
    %67 = vector.broadcast %66 : vector<4x1xf32> to vector<4x512xf32>
    %68 = arith.addf %65, %67 : vector<4x512xf32>
    %cst_27 = arith.constant 0.000000e+00 : f32
    %69 = vector.broadcast %cst_27 : f32 to vector<4x512xf32>
    %70 = arith.cmpf oge, %68, %69 : vector<4x512xf32>
    %cst_28 = arith.constant 2.000000e-01 : f32
    %71 = vector.broadcast %cst_28 : f32 to vector<4x512xf32>
    %72 = arith.mulf %71, %68 : vector<4x512xf32>
    %73 = arith.select %70, %68, %72 : vector<4x512xi1>, vector<4x512xf32>
    %c17_i32_29 = arith.constant 17 : i32
    %74 = tpu.dynamic_rotate %73 by %c17_i32_29 dim 1 : vector<4x512xf32>, i32 -> vector<4x512xf32>
    %75 = vector.extract_strided_slice %0 {offsets = [0, 0], sizes = [1, 512], strides = [1, 1]} : vector<9x512xf32> to vector<1x512xf32>
    %76 = vector.broadcast %75 : vector<1x512xf32> to vector<4x512xf32>
    %77 = arith.mulf %74, %76 : vector<4x512xf32>
    %c16_i32_30 = arith.constant 16 : i32
    %78 = tpu.dynamic_rotate %73 by %c16_i32_30 dim 1 : vector<4x512xf32>, i32 -> vector<4x512xf32>
    %79 = vector.extract_strided_slice %0 {offsets = [1, 0], sizes = [1, 512], strides = [1, 1]} : vector<9x512xf32> to vector<1x512xf32>
    %80 = vector.broadcast %79 : vector<1x512xf32> to vector<4x512xf32>
    %81 = arith.mulf %78, %80 : vector<4x512xf32>
    %c15_i32_31 = arith.constant 15 : i32
    %82 = tpu.dynamic_rotate %73 by %c15_i32_31 dim 1 : vector<4x512xf32>, i32 -> vector<4x512xf32>
    %83 = vector.extract_strided_slice %0 {offsets = [2, 0], sizes = [1, 512], strides = [1, 1]} : vector<9x512xf32> to vector<1x512xf32>
    %84 = vector.broadcast %83 : vector<1x512xf32> to vector<4x512xf32>
    %85 = arith.mulf %82, %84 : vector<4x512xf32>
    %c1_i32_32 = arith.constant 1 : i32
    %86 = tpu.dynamic_rotate %73 by %c1_i32_32 dim 1 : vector<4x512xf32>, i32 -> vector<4x512xf32>
    %87 = vector.extract_strided_slice %0 {offsets = [3, 0], sizes = [1, 512], strides = [1, 1]} : vector<9x512xf32> to vector<1x512xf32>
    %88 = vector.broadcast %87 : vector<1x512xf32> to vector<4x512xf32>
    %89 = arith.mulf %86, %88 : vector<4x512xf32>
    %c511_i32_33 = arith.constant 511 : i32
    %90 = tpu.dynamic_rotate %73 by %c511_i32_33 dim 1 : vector<4x512xf32>, i32 -> vector<4x512xf32>
    %91 = vector.extract_strided_slice %0 {offsets = [5, 0], sizes = [1, 512], strides = [1, 1]} : vector<9x512xf32> to vector<1x512xf32>
    %92 = vector.broadcast %91 : vector<1x512xf32> to vector<4x512xf32>
    %93 = arith.mulf %90, %92 : vector<4x512xf32>
    %c497_i32_34 = arith.constant 497 : i32
    %94 = tpu.dynamic_rotate %73 by %c497_i32_34 dim 1 : vector<4x512xf32>, i32 -> vector<4x512xf32>
    %95 = vector.extract_strided_slice %0 {offsets = [6, 0], sizes = [1, 512], strides = [1, 1]} : vector<9x512xf32> to vector<1x512xf32>
    %96 = vector.broadcast %95 : vector<1x512xf32> to vector<4x512xf32>
    %97 = arith.mulf %94, %96 : vector<4x512xf32>
    %c496_i32_35 = arith.constant 496 : i32
    %98 = tpu.dynamic_rotate %73 by %c496_i32_35 dim 1 : vector<4x512xf32>, i32 -> vector<4x512xf32>
    %99 = vector.extract_strided_slice %0 {offsets = [7, 0], sizes = [1, 512], strides = [1, 1]} : vector<9x512xf32> to vector<1x512xf32>
    %100 = vector.broadcast %99 : vector<1x512xf32> to vector<4x512xf32>
    %101 = arith.mulf %98, %100 : vector<4x512xf32>
    %c495_i32_36 = arith.constant 495 : i32
    %102 = tpu.dynamic_rotate %73 by %c495_i32_36 dim 1 : vector<4x512xf32>, i32 -> vector<4x512xf32>
    %103 = vector.extract_strided_slice %0 {offsets = [8, 0], sizes = [1, 512], strides = [1, 1]} : vector<9x512xf32> to vector<1x512xf32>
    %104 = vector.broadcast %103 : vector<1x512xf32> to vector<4x512xf32>
    %105 = arith.mulf %102, %104 : vector<4x512xf32>
    %106 = arith.truncf %77 : vector<4x512xf32> to vector<4x512xbf16>
    %c0_37 = arith.constant 0 : index
    %c0_38 = arith.constant 0 : index
    %107 = vector.load %arg9[%c0_37, %c0_38] : memref<36x512xbf16, #tpu.memory_space<vmem>>, vector<4x512xbf16>
    tpu.vector_store %arg9[%c0_37, %c0_38], %106 {strides = array<i32>} : memref<36x512xbf16, #tpu.memory_space<vmem>>, vector<4x512xbf16>,
    %108 = arith.truncf %81 : vector<4x512xf32> to vector<4x512xbf16>
    %c4_39 = arith.constant 4 : index
    %c0_40 = arith.constant 0 : index
    %109 = vector.load %arg9[%c4_39, %c0_40] : memref<36x512xbf16, #tpu.memory_space<vmem>>, vector<4x512xbf16>
    tpu.vector_store %arg9[%c4_39, %c0_40], %108 {strides = array<i32>} : memref<36x512xbf16, #tpu.memory_space<vmem>>, vector<4x512xbf16>,
    %110 = arith.truncf %85 : vector<4x512xf32> to vector<4x512xbf16>
    %c8_41 = arith.constant 8 : index
    %c0_42 = arith.constant 0 : index
    %111 = vector.load %arg9[%c8_41, %c0_42] : memref<36x512xbf16, #tpu.memory_space<vmem>>, vector<4x512xbf16>
    tpu.vector_store %arg9[%c8_41, %c0_42], %110 {strides = array<i32>} : memref<36x512xbf16, #tpu.memory_space<vmem>>, vector<4x512xbf16>,
    %112 = arith.truncf %89 : vector<4x512xf32> to vector<4x512xbf16>
    %c12_43 = arith.constant 12 : index
    %c0_44 = arith.constant 0 : index
    %113 = vector.load %arg9[%c12_43, %c0_44] : memref<36x512xbf16, #tpu.memory_space<vmem>>, vector<4x512xbf16>
    tpu.vector_store %arg9[%c12_43, %c0_44], %112 {strides = array<i32>} : memref<36x512xbf16, #tpu.memory_space<vmem>>, vector<4x512xbf16>,
    %114 = arith.truncf %73 : vector<4x512xf32> to vector<4x512xbf16>
    %c16_45 = arith.constant 16 : index
    %c0_46 = arith.constant 0 : index
    %115 = vector.load %arg9[%c16_45, %c0_46] : memref<36x512xbf16, #tpu.memory_space<vmem>>, vector<4x512xbf16>
    tpu.vector_store %arg9[%c16_45, %c0_46], %114 {strides = array<i32>} : memref<36x512xbf16, #tpu.memory_space<vmem>>, vector<4x512xbf16>,
    %116 = arith.truncf %93 : vector<4x512xf32> to vector<4x512xbf16>
    %c20_47 = arith.constant 20 : index
    %c0_48 = arith.constant 0 : index
    %117 = vector.load %arg9[%c20_47, %c0_48] : memref<36x512xbf16, #tpu.memory_space<vmem>>, vector<4x512xbf16>
    tpu.vector_store %arg9[%c20_47, %c0_48], %116 {strides = array<i32>} : memref<36x512xbf16, #tpu.memory_space<vmem>>, vector<4x512xbf16>,
    %118 = arith.truncf %97 : vector<4x512xf32> to vector<4x512xbf16>
    %c24_49 = arith.constant 24 : index
    %c0_50 = arith.constant 0 : index
    %119 = vector.load %arg9[%c24_49, %c0_50] : memref<36x512xbf16, #tpu.memory_space<vmem>>, vector<4x512xbf16>
    tpu.vector_store %arg9[%c24_49, %c0_50], %118 {strides = array<i32>} : memref<36x512xbf16, #tpu.memory_space<vmem>>, vector<4x512xbf16>,
    %120 = arith.truncf %101 : vector<4x512xf32> to vector<4x512xbf16>
    %c28_51 = arith.constant 28 : index
    %c0_52 = arith.constant 0 : index
    %121 = vector.load %arg9[%c28_51, %c0_52] : memref<36x512xbf16, #tpu.memory_space<vmem>>, vector<4x512xbf16>
    tpu.vector_store %arg9[%c28_51, %c0_52], %120 {strides = array<i32>} : memref<36x512xbf16, #tpu.memory_space<vmem>>, vector<4x512xbf16>,
    %122 = arith.truncf %105 : vector<4x512xf32> to vector<4x512xbf16>
    %c32_53 = arith.constant 32 : index
    %c0_54 = arith.constant 0 : index
    %123 = vector.load %arg9[%c32_53, %c0_54] : memref<36x512xbf16, #tpu.memory_space<vmem>>, vector<4x512xbf16>
    tpu.vector_store %arg9[%c32_53, %c0_54], %122 {strides = array<i32>} : memref<36x512xbf16, #tpu.memory_space<vmem>>, vector<4x512xbf16>,
    %c0_55 = arith.constant 0 : index
    %c0_56 = arith.constant 0 : index
    %124 = vector.load %arg4[%c0_55, %c0_56] : memref<8x36xbf16, #tpu.memory_space<vmem>>, vector<8x36xbf16>
    %c0_57 = arith.constant 0 : index
    %c0_58 = arith.constant 0 : index
    %125 = vector.load %arg9[%c0_57, %c0_58] : memref<36x512xbf16, #tpu.memory_space<vmem>>, vector<36x512xbf16>
    %cst_59 = arith.constant dense<0.000000e+00> : vector<8x512xf32>
    %126 = tpu.matmul %124, %125, %cst_59 {dimension_numbers = #tpu.dot_dimension_numbers<[1], [0], [0], [1], [0, 0, 1, 1], [], []>} : vector<8x36xbf16>, vector<36x512xbf16>, vector<8x512xf32> -> vector<8x512xf32>
    %c0_60 = arith.constant 0 : index
    %c0_61 = arith.constant 0 : index
    %127 = vector.load %arg5[%c0_60, %c0_61] : memref<8x1xf32, #tpu.memory_space<vmem>>, vector<8x1xf32>
    %128 = vector.broadcast %127 : vector<8x1xf32> to vector<8x512xf32>
    %129 = arith.addf %126, %128 : vector<8x512xf32>
    %130 = vector.extract_strided_slice %7 {offsets = [0, 0], sizes = [8, 256], strides = [1, 1]} : vector<8x512xf32> to vector<8x256xf32>
    %131 = vector.extract_strided_slice %129 {offsets = [0, 0], sizes = [8, 256], strides = [1, 1]} : vector<8x512xf32> to vector<8x256xf32>
    %cst_62 = arith.constant 1.000000e-01 : f32
    %132 = vector.broadcast %cst_62 : f32 to vector<8x256xf32>
    %133 = arith.mulf %132, %131 : vector<8x256xf32>
    %134 = arith.addf %130, %133 : vector<8x256xf32>
    %c0_63 = arith.constant 0 : index
    %c0_64 = arith.constant 0 : index
    %c0_65 = arith.constant 0 : index
    %135 = vector.load %arg8[%c0_63, %c0_64, %c0_65] : memref<2x8x256xf32, #tpu.memory_space<vmem>>, vector<1x8x256xf32>
    %136 = vector.shape_cast %135 : vector<1x8x256xf32> to vector<8x256xf32>
    %137 = vector.shape_cast %134 : vector<8x256xf32> to vector<1x8x256xf32>
    tpu.vector_store %arg8[%c0_63, %c0_64, %c0_65], %137 {strides = array<i32>} : memref<2x8x256xf32, #tpu.memory_space<vmem>>, vector<1x8x256xf32>,
    %138 = vector.extract_strided_slice %7 {offsets = [0, 256], sizes = [8, 256], strides = [1, 1]} : vector<8x512xf32> to vector<8x256xf32>
    %139 = vector.extract_strided_slice %129 {offsets = [0, 256], sizes = [8, 256], strides = [1, 1]} : vector<8x512xf32> to vector<8x256xf32>
    %cst_66 = arith.constant 1.000000e-01 : f32
    %140 = vector.broadcast %cst_66 : f32 to vector<8x256xf32>
    %141 = arith.mulf %140, %139 : vector<8x256xf32>
    %142 = arith.addf %138, %141 : vector<8x256xf32>
    %c1_67 = arith.constant 1 : index
    %c0_68 = arith.constant 0 : index
    %c0_69 = arith.constant 0 : index
    %143 = vector.load %arg8[%c1_67, %c0_68, %c0_69] : memref<2x8x256xf32, #tpu.memory_space<vmem>>, vector<1x8x256xf32>
    %144 = vector.shape_cast %143 : vector<1x8x256xf32> to vector<8x256xf32>
    %145 = vector.shape_cast %142 : vector<8x256xf32> to vector<1x8x256xf32>
    tpu.vector_store %arg8[%c1_67, %c0_68, %c0_69], %145 {strides = array<i32>} : memref<2x8x256xf32, #tpu.memory_space<vmem>>, vector<1x8x256xf32>,
    return
  }
  func.func @transform_0(%arg0: i32) -> (i32, i32, i32) {
    %c0_i32 = arith.constant 0 : i32
    %c0_i32_0 = arith.constant 0 : i32
    %c0_i32_1 = arith.constant 0 : i32
    return %arg0, %c0_i32, %c0_i32_0 : i32, i32, i32
  }
  func.func @transform_1(%arg0: i32) -> (i32, i32) {
    %c0_i32 = arith.constant 0 : i32
    %c0_i32_0 = arith.constant 0 : i32
    %c0_i32_1 = arith.constant 0 : i32
    return %c0_i32, %c0_i32_0 : i32, i32
  }
  func.func @transform_2(%arg0: i32) -> (i32, i32) {
    %c0_i32 = arith.constant 0 : i32
    %c0_i32_0 = arith.constant 0 : i32
    %c0_i32_1 = arith.constant 0 : i32
    return %c0_i32, %c0_i32_0 : i32, i32
  }
  func.func @transform_3(%arg0: i32) -> (i32, i32) {
    %c0_i32 = arith.constant 0 : i32
    %c0_i32_0 = arith.constant 0 : i32
    %c0_i32_1 = arith.constant 0 : i32
    return %c0_i32, %c0_i32_0 : i32, i32
  }
  func.func @transform_4(%arg0: i32) -> (i32, i32) {
    %c0_i32 = arith.constant 0 : i32
    %c0_i32_0 = arith.constant 0 : i32
    %c0_i32_1 = arith.constant 0 : i32
    return %c0_i32, %c0_i32_0 : i32, i32
  }
  func.func @transform_5(%arg0: i32) -> (i32, i32) {
    %c0_i32 = arith.constant 0 : i32
    %c0_i32_0 = arith.constant 0 : i32
    %c0_i32_1 = arith.constant 0 : i32
    return %c0_i32, %c0_i32_0 : i32, i32
  }
  func.func @transform_6(%arg0: i32) -> (i32, i32) {
    %c0_i32 = arith.constant 0 : i32
    %c0_i32_0 = arith.constant 0 : i32
    %c0_i32_1 = arith.constant 0 : i32
    return %c0_i32, %c0_i32_0 : i32, i32
  }
  func.func @transform_7(%arg0: i32) -> (i32, i32, i32) {
    %c0_i32 = arith.constant 0 : i32
    %c0_i32_0 = arith.constant 0 : i32
    %c0_i32_1 = arith.constant 0 : i32
    return %arg0, %c0_i32, %c0_i32_0 : i32, i32, i32
  }
}

</mosaic_0001>

<llo_original>
// kernel: resnet_block_style_svd.1
$region0: #{resnet_block_style_svd.1}
  #allocation0 [shape = 'u32[]', space=smem, size = 0x4, offset = 0x4, fixed_abs, tag = 'smem constant byte address 0x4 - core index']
  #allocation1 [shape = 'u32[144,128]{1,0:T(1,128)}', space=vmem, size = 0x12000, scoped, tag = 'internal scratch']
  #allocation2 [shape = 'bf16[36,512]{1,0:T(8,128)(2,1)}', space=vmem, size = 0xa000, scoped, tag = 'scratch operand']
  %s0 = inlined_call_operand.vmem [shape: f32[4,4,256], index: 0, kind: input, shape index: {}]
  %s1 = inlined_call_operand.vmem [shape: bf16[4,36], index: 1, kind: input, shape index: {}]
  %s2 = inlined_call_operand.vmem [shape: f32[4,1], index: 2, kind: input, shape index: {}]
  %s3 = inlined_call_operand.vmem [shape: bf16[8,36], index: 3, kind: input, shape index: {}]
  %s4 = inlined_call_operand.vmem [shape: f32[8,1], index: 4, kind: input, shape index: {}]
  %s5 = inlined_call_operand.vmem [shape: f32[9,512], index: 5, kind: input, shape index: {}]
  %s6 = inlined_call_operand.vmem [shape: f32[8,4], index: 6, kind: input, shape index: {}]
  %s7 = inlined_call_operand.vmem [shape: f32[4,8,256], index: 7, kind: output, shape index: {}]
  %s8 = sld [smem:[#allocation0]]
  $region61: #{resnet_block_style_svd.1} parent=0
    _
  %s10 = ssub.s32 1, %s8
  %s11 = scalar_select 0, %s10, %s8
  loop: start=0, step=1, limit=4
  $region2: #{resnet_block_style_svd.1} parent=0 // loop_pre_header
    _
  $region3: #{resnet_block_style_svd.1} parent=0 // loop_header
    %s13 = sphi 0, %s17
    %p14 = scmp.ge.s32.totalorder %s13, 4
    %s23 = sphi 0, %s25
    %s26 = sphi 0, %s23
    %s27 = sphi 0, %s26
    %s43 = sphi 0, %s27
    %s47 = sphi 0, %s47
    %s49 = sphi 0, %s47
    %s50 = sphi 0, %s49
    %s64 = sphi 0, %s50
    %s68 = sphi 0, %s68
    %s70 = sphi 0, %s68
    %s71 = sphi 0, %s70
    %s85 = sphi 0, %s71
    %s89 = sphi 0, %s89
    %s91 = sphi 0, %s89
    %s92 = sphi 0, %s91
    %s106 = sphi 0, %s92
    %s110 = sphi 0, %s110
    %s112 = sphi 0, %s110
    %s113 = sphi 0, %s112
    %s127 = sphi 0, %s113
    %s131 = sphi 0, %s131
    %s133 = sphi 0, %s131
    %s134 = sphi 0, %s133
    %s148 = sphi 0, %s134
    %s152 = sphi 0, %s152
    %s154 = sphi 0, %s152
    %s155 = sphi 0, %s154
    %s169 = sphi 0, %s155
    %s175 = sphi 0, %s177
    %s178 = sphi 0, %s175
    %s179 = sphi 0, %s178
    %s195 = sphi 0, %s179
  $region4: #{resnet_block_style_svd.1} parent=0 // loop_header_branch
    %16 = sbr.rel (%p14) target = $region8
  $region5: #{resnet_block_style_svd.1} parent=0 // loop_body
    %s18 = ssub.s32 %s13, 1
    %s19 = ssub.s32 %s13, 2
    %s20 = sadd.s32 %s13, 1
    %s21 = ssub.s32 %s13, %s20
    %p22 = scmp.eq.s32.totalorder %s21, 0
    %s24 = sadd.s32 %s23, 1
    %s25 = scalar_select %p22, %s23, %s24
    %p28 = pneg %p22
    %p29 = scmp.eq.s32.totalorder %s13, 1
    %p30 = por %p28, %p29
    %p31 = scmp.ne.s32.totalorder %s23, %s26
    %p32 = scmp.eq.s32.totalorder %s13, 0
    %p33 = por %p31, %p32
    %p34 = scmp.ne.s32.totalorder %s23, %s26
    %p35 = scmp.eq.s32.totalorder %s18, 1
    %p36 = por %p34, %p35
    %p37 = scmp.ne.s32.totalorder %s26, %s27
    %p38 = scmp.eq.s32.totalorder %s18, 0
    %p39 = por %p37, %p38
    %p40 = scmp.ne.s32.totalorder %s26, %s27
    %p41 = scmp.eq.s32.totalorder %s19, 1
    %p42 = por %p40, %p41
    %p44 = scmp.ne.s32.totalorder %s27, %s43
    %p45 = scmp.eq.s32.totalorder %s19, 0
    %p46 = por %p44, %p45
    %s48 = sadd.s32 %s47, 1
    %p51 = scmp.eq.s32.totalorder %s13, 1
    %p52 = scmp.ne.s32.totalorder %s47, %s49
    %p53 = scmp.eq.s32.totalorder %s13, 0
    %p54 = por %p52, %p53
    %p55 = scmp.ne.s32.totalorder %s47, %s49
    %p56 = scmp.eq.s32.totalorder %s18, 1
    %p57 = por %p55, %p56
    %p58 = scmp.ne.s32.totalorder %s49, %s50
    %p59 = scmp.eq.s32.totalorder %s18, 0
    %p60 = por %p58, %p59
    %p61 = scmp.ne.s32.totalorder %s49, %s50
    %p62 = scmp.eq.s32.totalorder %s19, 1
    %p63 = por %p61, %p62
    %p65 = scmp.ne.s32.totalorder %s50, %s64
    %p66 = scmp.eq.s32.totalorder %s19, 0
    %p67 = por %p65, %p66
    %s69 = sadd.s32 %s68, 1
    %p72 = scmp.eq.s32.totalorder %s13, 1
    %p73 = scmp.ne.s32.totalorder %s68, %s70
    %p74 = scmp.eq.s32.totalorder %s13, 0
    %p75 = por %p73, %p74
    %p76 = scmp.ne.s32.totalorder %s68, %s70
    %p77 = scmp.eq.s32.totalorder %s18, 1
    %p78 = por %p76, %p77
    %p79 = scmp.ne.s32.totalorder %s70, %s71
    %p80 = scmp.eq.s32.totalorder %s18, 0
    %p81 = por %p79, %p80
    %p82 = scmp.ne.s32.totalorder %s70, %s71
    %p83 = scmp.eq.s32.totalorder %s19, 1
    %p84 = por %p82, %p83
    %p86 = scmp.ne.s32.totalorder %s71, %s85
    %p87 = scmp.eq.s32.totalorder %s19, 0
    %p88 = por %p86, %p87
    %s90 = sadd.s32 %s89, 1
    %p93 = scmp.eq.s32.totalorder %s13, 1
    %p94 = scmp.ne.s32.totalorder %s89, %s91
    %p95 = scmp.eq.s32.totalorder %s13, 0
    %p96 = por %p94, %p95
    %p97 = scmp.ne.s32.totalorder %s89, %s91
    %p98 = scmp.eq.s32.totalorder %s18, 1
    %p99 = por %p97, %p98
    %p100 = scmp.ne.s32.totalorder %s91, %s92
    %p101 = scmp.eq.s32.totalorder %s18, 0
    %p102 = por %p100, %p101
    %p103 = scmp.ne.s32.totalorder %s91, %s92
    %p104 = scmp.eq.s32.totalorder %s19, 1
    %p105 = por %p103, %p104
    %p107 = scmp.ne.s32.totalorder %s92, %s106
    %p108 = scmp.eq.s32.totalorder %s19, 0
    %p109 = por %p107, %p108
    %s111 = sadd.s32 %s110, 1
    %p114 = scmp.eq.s32.totalorder %s13, 1
    %p115 = scmp.ne.s32.totalorder %s110, %s112
    %p116 = scmp.eq.s32.totalorder %s13, 0
    %p117 = por %p115, %p116
    %p118 = scmp.ne.s32.totalorder %s110, %s112
    %p119 = scmp.eq.s32.totalorder %s18, 1
    %p120 = por %p118, %p119
    %p121 = scmp.ne.s32.totalorder %s112, %s113
    %p122 = scmp.eq.s32.totalorder %s18, 0
    %p123 = por %p121, %p122
    %p124 = scmp.ne.s32.totalorder %s112, %s113
    %p125 = scmp.eq.s32.totalorder %s19, 1
    %p126 = por %p124, %p125
    %p128 = scmp.ne.s32.totalorder %s113, %s127
    %p129 = scmp.eq.s32.totalorder %s19, 0
    %p130 = por %p128, %p129
    %s132 = sadd.s32 %s131, 1
    %p135 = scmp.eq.s32.totalorder %s13, 1
    %p136 = scmp.ne.s32.totalorder %s131, %s133
    %p137 = scmp.eq.s32.totalorder %s13, 0
    %p138 = por %p136, %p137
    %p139 = scmp.ne.s32.totalorder %s131, %s133
    %p140 = scmp.eq.s32.totalorder %s18, 1
    %p141 = por %p139, %p140
    %p142 = scmp.ne.s32.totalorder %s133, %s134
    %p143 = scmp.eq.s32.totalorder %s18, 0
    %p144 = por %p142, %p143
    %p145 = scmp.ne.s32.totalorder %s133, %s134
    %p146 = scmp.eq.s32.totalorder %s19, 1
    %p147 = por %p145, %p146
    %p149 = scmp.ne.s32.totalorder %s134, %s148
    %p150 = scmp.eq.s32.totalorder %s19, 0
    %p151 = por %p149, %p150
    %s153 = sadd.s32 %s152, 1
    %p156 = scmp.eq.s32.totalorder %s13, 1
    %p157 = scmp.ne.s32.totalorder %s152, %s154
    %p158 = scmp.eq.s32.totalorder %s13, 0
    %p159 = por %p157, %p158
    %p160 = scmp.ne.s32.totalorder %s152, %s154
    %p161 = scmp.eq.s32.totalorder %s18, 1
    %p162 = por %p160, %p161
    %p163 = scmp.ne.s32.totalorder %s154, %s155
    %p164 = scmp.eq.s32.totalorder %s18, 0
    %p165 = por %p163, %p164
    %p166 = scmp.ne.s32.totalorder %s154, %s155
    %p167 = scmp.eq.s32.totalorder %s19, 1
    %p168 = por %p166, %p167
    %p170 = scmp.ne.s32.totalorder %s155, %s169
    %p171 = scmp.eq.s32.totalorder %s19, 0
    %p172 = por %p170, %p171
    %s173 = ssub.s32 %s13, %s20
    %p174 = scmp.eq.s32.totalorder %s173, 0
    %s176 = sadd.s32 %s175, 1
    %s177 = scalar_select %p174, %s175, %s176
    %p180 = pneg %p174
    %p181 = scmp.eq.s32.totalorder %s13, 1
    %p182 = por %p180, %p181
    %p183 = scmp.ne.s32.totalorder %s175, %s178
    %p184 = scmp.eq.s32.totalorder %s13, 0
    %p185 = por %p183, %p184
    %p186 = scmp.ne.s32.totalorder %s175, %s178
    %p187 = scmp.eq.s32.totalorder %s18, 1
    %p188 = por %p186, %p187
    %p189 = scmp.ne.s32.totalorder %s178, %s179
    %p190 = scmp.eq.s32.totalorder %s18, 0
    %p191 = por %p189, %p190
    %p192 = scmp.ne.s32.totalorder %s178, %s179
    %p193 = scmp.eq.s32.totalorder %s19, 1
    %p194 = por %p192, %p193
    %p196 = scmp.ne.s32.totalorder %s179, %s195
    %p197 = scmp.eq.s32.totalorder %s19, 0
    %p198 = por %p196, %p197
    %p199 = scmp.le.s32.totalorder 1, %s13
    %p200 = scmp.lt.s32.totalorder %s13, 3
    %p201 = pnand %p199, %p200
    %p202 = pneg %p201
    // Predicated region
    $region9: #{resnet_block_style_svd.1} parent=5 // pred_check
      _
    $region10: #{resnet_block_style_svd.1} parent=5 // pred_check_branch
      %204 = sbr.rel (%p201) target = $region12
    $region11: #{resnet_block_style_svd.1} parent=5 // pred_region
      %s205 = ssub.s32 %s13, 1
      // Predicated region
      $region13: #{resnet_block_style_svd.1} parent=11 // pred_check
        %p206 = pneg %p60
      $region14: #{resnet_block_style_svd.1} parent=11 // pred_check_branch
        %208 = sbr.rel (%p206) target = $region16
      $region15: #{resnet_block_style_svd.1} parent=11 // pred_region
        _
      $region16: #{resnet_block_style_svd.1} parent=11 // pred_fallthru
        _
      // Predicated region
      $region17: #{resnet_block_style_svd.1} parent=11 // pred_check
        %p209 = pneg %p81
      $region18: #{resnet_block_style_svd.1} parent=11 // pred_check_branch
        %211 = sbr.rel (%p209) target = $region20
      $region19: #{resnet_block_style_svd.1} parent=11 // pred_region
        _
      $region20: #{resnet_block_style_svd.1} parent=11 // pred_fallthru
        _
      // Predicated region
      $region21: #{resnet_block_style_svd.1} parent=11 // pred_check
        %p212 = pneg %p102
      $region22: #{resnet_block_style_svd.1} parent=11 // pred_check_branch
        %214 = sbr.rel (%p212) target = $region24
      $region23: #{resnet_block_style_svd.1} parent=11 // pred_region
        _
      $region24: #{resnet_block_style_svd.1} parent=11 // pred_fallthru
        _
      // Predicated region
      $region25: #{resnet_block_style_svd.1} parent=11 // pred_check
        %p215 = pneg %p123
      $region26: #{resnet_block_style_svd.1} parent=11 // pred_check_branch
        %217 = sbr.rel (%p215) target = $region28
      $region27: #{resnet_block_style_svd.1} parent=11 // pred_region
        _
      $region28: #{resnet_block_style_svd.1} parent=11 // pred_fallthru
        _
      // Predicated region
      $region29: #{resnet_block_style_svd.1} parent=11 // pred_check
        %p218 = pneg %p144
      $region30: #{resnet_block_style_svd.1} parent=11 // pred_check_branch
        %220 = sbr.rel (%p218) target = $region32
      $region31: #{resnet_block_style_svd.1} parent=11 // pred_region
        _
      $region32: #{resnet_block_style_svd.1} parent=11 // pred_fallthru
        _
      // Predicated region
      $region33: #{resnet_block_style_svd.1} parent=11 // pred_check
        %p221 = pneg %p165
      $region34: #{resnet_block_style_svd.1} parent=11 // pred_check_branch
        %223 = sbr.rel (%p221) target = $region36
      $region35: #{resnet_block_style_svd.1} parent=11 // pred_region
        _
      $region36: #{resnet_block_style_svd.1} parent=11 // pred_fallthru
        _
    $region12: #{resnet_block_style_svd.1} parent=5 // pred_fallthru
      _
    %p224 = scmp.lt.s32.totalorder %s13, 2
    // Predicated region
    $region37: #{resnet_block_style_svd.1} parent=5 // pred_check
      %p225 = pneg %p224
    $region38: #{resnet_block_style_svd.1} parent=5 // pred_check_branch
      %227 = sbr.rel (%p225) target = $region40
    $region39: #{resnet_block_style_svd.1} parent=5 // pred_region
      // Predicated region
      $region41: #{resnet_block_style_svd.1} parent=39 // pred_check
        %p228 = pneg %p33
      $region42: #{resnet_block_style_svd.1} parent=39 // pred_check_branch
        %230 = sbr.rel (%p228) target = $region44
      $region43: #{resnet_block_style_svd.1} parent=39 // pred_region
        %s231 = smul.u32 2, %s13
        %p232 = scmp.lt.s32.totalorder %s231, 3
        %s233 = scalar_select %p232, %s231, 3
        %s234 = smul.addr %s233, 2
        %s235 = smul.addr %s234, 4
        %s236 = scalar_lea.vmem %s0, %s235
        %s237 = smul.u32 2, %s13
      $region44: #{resnet_block_style_svd.1} parent=39 // pred_fallthru
        _
    $region40: #{resnet_block_style_svd.1} parent=5 // pred_fallthru
      _
    %p238 = scmp.le.s32.totalorder 1, %s13
    %p239 = scmp.lt.s32.totalorder %s13, 3
    %p240 = pnand %p238, %p239
    %p241 = pneg %p240
    // Predicated region
    $region45: #{resnet_block_style_svd.1} parent=5 // pred_check
      _
    $region46: #{resnet_block_style_svd.1} parent=5 // pred_check_branch
      %243 = sbr.rel (%p240) target = $region48
    $region47: #{resnet_block_style_svd.1} parent=5 // pred_region
      %s244 = ssub.s32 %s13, 1
      %s245 = smul.u32 2, %s18
      %p246 = scmp.lt.s32.totalorder %s245, 3
      %s247 = scalar_select %p246, %s245, 3
      %s248 = smul.addr %s247, 2
      %s249 = smul.addr %s248, 4
      %s250 = scalar_lea.vmem %s0, %s249
      %p251 = pneg %p39
      %p252 = pneg %p36
      %p253 = pneg %p60
      %p254 = pneg %p57
      %p255 = pneg %p81
      %p256 = pneg %p78
      %p257 = pneg %p102
      %p258 = pneg %p99
      %p259 = pneg %p123
      %p260 = pneg %p120
      %p261 = pneg %p144
      %p262 = pneg %p141
      %p263 = pneg %p165
      %p264 = pneg %p162
      %p265 = pneg %p191
      %p266 = pneg %p188
      %s267 = smul.u32 2, %s18
      %p268 = scmp.lt.s32.totalorder %s267, 3
      %s269 = scalar_select %p268, %s267, 3
      %s270 = smul.addr %s269, 2
      %s271 = smul.addr %s270, 8
      %s272 = scalar_lea.vmem %s7, %s271
      %s273 = smul.u32 2, %s18
      %p274 = scmp.lt.s32.totalorder %s273, 3
      %s275 = scalar_select %p274, %s273, 3
      %s276 = smul.addr %s275, 2
      %s277 = smul.addr %s276, 4
      %s278 = scalar_lea.vmem %s0, %s277
      %s279 = smul.u32 2, %s18
      %s280 = smul.u32 2, %s18
      %p281 = scmp.lt.s32.totalorder %s280, 3
      %s282 = scalar_select %p281, %s280, 3
      %s283 = smul.addr %s282, 2
      %s284 = smul.addr %s283, 8
      %s285 = scalar_lea.vmem %s7, %s284
      %s286 = smul.u32 2, %s18
      %v288 = vld [vmem:[%s5] sm:$0xff]
      %v289 = vld [vmem:[%s5 + $0x8] sm:$0xff]
      %v290 = vld [vmem:[%s5 + $0x10] sm:$0xff]
      %v291 = vld [vmem:[%s5 + $0x18] sm:$0xff]
      %v292 = vld [vmem:[%s5 + $0x20] sm:$0x1]
      %v293 = vld [vmem:[%s5 + $0x28] sm:$0x1]
      %v294 = vld [vmem:[%s5 + $0x30] sm:$0x1]
      %v295 = vld [vmem:[%s5 + $0x38] sm:$0x1]
      %v296 = vld [vmem:[%s278] sm:$0xff]
      %s297 = scalar_lea.vmem %s278, 8
      %v298 = vld [vmem:[%s297] sm:$0xff]
      %v300 = vcombine.high %v296, %v296
      %v303 = vcombine.high %v298, %v298
      %v305 = vld [vmem:[%s6] sm:$0xff]
      %vm306 = vcmask 31744
      %v308 = vsel %vm306, %v305, 0
      %vm310 = vcmask 1043456
      %v311 = vsel %vm310, %v296, 0
      %v313 = vsel %vm310, %v300, 0
      %v315 = vsel %vm310, %v298, 0
      %v317 = vsel %vm310, %v303, 0
      %319 = vmatprep.subr.mxu0 %v313
      %320 = vmatpush1.msra.mxu0 %v311
      %321 = vmatprep.subr.mxu0 0.0
      %322 = vmatpush1.msra.mxu0 0.0
      %323 = vmatprep.subr.mxu0 0.0
      %324 = vmatpush1.msra.mxu0 0.0
      %325 = vmatprep.subr.mxu0 0.0
      %326 = vmatpush1.msra.mxu0 0.0
      %327 = vmatprep.subr.mxu0 0.0
      %328 = vmatpush1.msra.mxu0 0.0
      %329 = vmatprep.subr.mxu0 0.0
      %330 = vmatpush1.msra.mxu0 0.0
      %331 = vmatprep.subr.mxu0 0.0
      %332 = vmatpush1.msra.mxu0 0.0
      %333 = vmatprep.subr.mxu0 0.0
      %334 = vmatpush1.msra.mxu0 0.0
      %335 = vmatprep.subr.mxu0 0.0
      %336 = vmatpush1.msra.mxu0 0.0
      %337 = vmatprep.subr.mxu0 0.0
      %338 = vmatpush1.msra.mxu0 0.0
      %339 = vmatprep.subr.mxu0 0.0
      %340 = vmatpush1.msra.mxu0 0.0
      %341 = vmatprep.subr.mxu0 0.0
      %342 = vmatpush1.msra.mxu0 0.0
      %343 = vmatprep.subr.mxu0 0.0
      %344 = vmatpush1.msra.mxu0 0.0
      %345 = vmatprep.subr.mxu0 0.0
      %346 = vmatpush1.msra.mxu0 0.0
      %347 = vmatprep.subr.mxu0 0.0
      %348 = vmatpush1.msra.mxu0 0.0
      %349 = vmatprep.subr.mxu0 0.0
      %350 = vmatpush1.msra.mxu0 0.0
      %351 = vmatprep.subr.mxu0 0.0
      %352 = vmatpush1.msra.mxu0 0.0
      %353 = vmatprep.subr.mxu0 0.0
      %354 = vmatpush1.msra.mxu0 0.0
      %355 = vmatprep.subr.mxu0 0.0
      %356 = vmatpush1.msra.mxu0 0.0
      %357 = vmatprep.subr.mxu0 0.0
      %358 = vmatpush1.msra.mxu0 0.0
      %359 = vmatprep.subr.mxu0 0.0
      %360 = vmatpush1.msra.mxu0 0.0
      %361 = vmatprep.subr.mxu0 0.0
      %362 = vmatpush1.msra.mxu0 0.0
      %363 = vmatprep.subr.mxu0 0.0
      %364 = vmatpush1.msra.mxu0 0.0
      %365 = vmatprep.subr.mxu0 0.0
      %366 = vmatpush1.msra.mxu0 0.0
      %367 = vmatprep.subr.mxu0 0.0
      %368 = vmatpush1.msra.mxu0 0.0
      %369 = vmatprep.subr.mxu0 0.0
      %370 = vmatpush1.msra.mxu0 0.0
      %371 = vmatprep.subr.mxu0 0.0
      %372 = vmatpush1.msra.mxu0 0.0
      %373 = vmatprep.subr.mxu0 0.0
      %374 = vmatpush1.msra.mxu0 0.0
      %375 = vmatprep.subr.mxu0 0.0
      %376 = vmatpush1.msra.mxu0 0.0
      %377 = vmatprep.subr.mxu0 0.0
      %378 = vmatpush1.msra.mxu0 0.0
      %379 = vmatprep.subr.mxu0 0.0
      %380 = vmatpush1.msra.mxu0 0.0
      %381 = vmatprep.subr.mxu0 0.0
      %382 = vmatpush1.msra.mxu0 0.0
      %383 = vmatprep.mubr.f32.mxu0 0.0
      %384 = vmatmul.mubr.f32.gmra.mrb[0].mxu0 %v308
      %v385 = vpop.f32.mrb[0].mxu0
      %v386 = vadd.f32 0.0, %v385
      %v387 = vpop.f32.mrb[0].mxu0
      %v388 = vadd.f32 0.0, %v387
      %389 = vdwg.mxu0
      %390 = vmatprep.subr.mxu0 %v317
      %391 = vmatpush1.msra.mxu0 %v315
      %392 = vmatprep.subr.mxu0 0.0
      %393 = vmatpush1.msra.mxu0 0.0
      %394 = vmatprep.subr.mxu0 0.0
      %395 = vmatpush1.msra.mxu0 0.0
      %396 = vmatprep.subr.mxu0 0.0
      %397 = vmatpush1.msra.mxu0 0.0
      %398 = vmatprep.subr.mxu0 0.0
      %399 = vmatpush1.msra.mxu0 0.0
      %400 = vmatprep.subr.mxu0 0.0
      %401 = vmatpush1.msra.mxu0 0.0
      %402 = vmatprep.subr.mxu0 0.0
      %403 = vmatpush1.msra.mxu0 0.0
      %404 = vmatprep.subr.mxu0 0.0
      %405 = vmatpush1.msra.mxu0 0.0
      %406 = vmatprep.subr.mxu0 0.0
      %407 = vmatpush1.msra.mxu0 0.0
      %408 = vmatprep.subr.mxu0 0.0
      %409 = vmatpush1.msra.mxu0 0.0
      %410 = vmatprep.subr.mxu0 0.0
      %411 = vmatpush1.msra.mxu0 0.0
      %412 = vmatprep.subr.mxu0 0.0
      %413 = vmatpush1.msra.mxu0 0.0
      %414 = vmatprep.subr.mxu0 0.0
      %415 = vmatpush1.msra.mxu0 0.0
      %416 = vmatprep.subr.mxu0 0.0
      %417 = vmatpush1.msra.mxu0 0.0
      %418 = vmatprep.subr.mxu0 0.0
      %419 = vmatpush1.msra.mxu0 0.0
      %420 = vmatprep.subr.mxu0 0.0
      %421 = vmatpush1.msra.mxu0 0.0
      %422 = vmatprep.subr.mxu0 0.0
      %423 = vmatpush1.msra.mxu0 0.0
      %424 = vmatprep.subr.mxu0 0.0
      %425 = vmatpush1.msra.mxu0 0.0
      %426 = vmatprep.subr.mxu0 0.0
      %427 = vmatpush1.msra.mxu0 0.0
      %428 = vmatprep.subr.mxu0 0.0
      %429 = vmatpush1.msra.mxu0 0.0
      %430 = vmatprep.subr.mxu0 0.0
      %431 = vmatpush1.msra.mxu0 0.0
      %432 = vmatprep.subr.mxu0 0.0
      %433 = vmatpush1.msra.mxu0 0.0
      %434 = vmatprep.subr.mxu0 0.0
      %435 = vmatpush1.msra.mxu0 0.0
      %436 = vmatprep.subr.mxu0 0.0
      %437 = vmatpush1.msra.mxu0 0.0
      %438 = vmatprep.subr.mxu0 0.0
      %439 = vmatpush1.msra.mxu0 0.0
      %440 = vmatprep.subr.mxu0 0.0
      %441 = vmatpush1.msra.mxu0 0.0
      %442 = vmatprep.subr.mxu0 0.0
      %443 = vmatpush1.msra.mxu0 0.0
      %444 = vmatprep.subr.mxu0 0.0
      %445 = vmatpush1.msra.mxu0 0.0
      %446 = vmatprep.subr.mxu0 0.0
      %447 = vmatpush1.msra.mxu0 0.0
      %448 = vmatprep.subr.mxu0 0.0
      %449 = vmatpush1.msra.mxu0 0.0
      %450 = vmatprep.subr.mxu0 0.0
      %451 = vmatpush1.msra.mxu0 0.0
      %452 = vmatprep.subr.mxu0 0.0
      %453 = vmatpush1.msra.mxu0 0.0
      %454 = vmatprep.mubr.f32.mxu0 0.0
      %455 = vmatmul.mubr.f32.gmra.mrb[0].mxu0 %v308
      %v456 = vpop.f32.mrb[0].mxu0
      %v457 = vadd.f32 0.0, %v456
      %v458 = vpop.f32.mrb[0].mxu0
      %v459 = vadd.f32 0.0, %v458
      %460 = vdwg.mxu0
      %vm461 = vcmp.ge.f32.partialorder %v296, 0.0
      %vm462 = vcmp.ge.f32.partialorder %v300, 0.0
      %vm463 = vcmp.ge.f32.partialorder %v298, 0.0
      %vm464 = vcmp.ge.f32.partialorder %v303, 0.0
      %v465 = vmul.f32 %v296, 0.2
      %v466 = vmul.f32 %v300, 0.2
      %v467 = vmul.f32 %v298, 0.2
      %v468 = vmul.f32 %v303, 0.2
      %v469 = vsel %vm461, %v296, %v465
      %v470 = vsel %vm462, %v300, %v466
      %v471 = vsel %vm463, %v298, %v467
      %v472 = vsel %vm464, %v303, %v468
      %473 = vrot.lane.b32.xlu0 %v469, 17
      %v474 = vpop.permute.xlu0 %473
      %475 = vrot.lane.b32.xlu0 %v470, 17
      %v476 = vpop.permute.xlu0 %475
      %477 = vrot.lane.b32.xlu0 %v471, 17
      %v478 = vpop.permute.xlu0 %477
      %479 = vrot.lane.b32.xlu0 %v472, 17
      %v480 = vpop.permute.xlu0 %479
      %v481 = vlaneseq
      %v482 = vand.u32 %v481, 127
      %vm483 = vcmp.lt.s32.totalorder %v482, 17
      %v484 = vsel %vm483, %v478, %v480
      %v485 = vsel %vm483, %v476, %v478
      %v486 = vsel %vm483, %v474, %v476
      %v487 = vsel %vm483, %v480, %v474
      %v488 = vlaneseq
      %v489 = vshrl.u32 %v488, 7
      %v490 = vsub.s32 0, %v489
      %v491 = vrot.slane %v288, %v490
      %v492 = vlaneseq
      %v493 = vshrl.u32 %v492, 7
      %v494 = vsub.s32 0, %v493
      %v495 = vrot.slane %v289, %v494
      %v496 = vlaneseq
      %v497 = vshrl.u32 %v496, 7
      %v498 = vsub.s32 0, %v497
      %v499 = vrot.slane %v290, %v498
      %v500 = vlaneseq
      %v501 = vshrl.u32 %v500, 7
      %v502 = vsub.s32 0, %v501
      %v503 = vrot.slane %v291, %v502
      %v504 = vmul.f32 %v487, %v491
      %v505 = vmul.f32 %v486, %v495
      %v506 = vmul.f32 %v485, %v499
      %v507 = vmul.f32 %v484, %v503
      %508 = vrot.lane.b32.xlu0 %v469, 16
      %v509 = vpop.permute.xlu0 %508
      %510 = vrot.lane.b32.xlu0 %v470, 16
      %v511 = vpop.permute.xlu0 %510
      %512 = vrot.lane.b32.xlu0 %v471, 16
      %v513 = vpop.permute.xlu0 %512
      %514 = vrot.lane.b32.xlu0 %v472, 16
      %v515 = vpop.permute.xlu0 %514
      %vm516 = vcmp.lt.s32.totalorder %v482, 16
      %v517 = vsel %vm516, %v513, %v515
      %v518 = vsel %vm516, %v511, %v513
      %v519 = vsel %vm516, %v509, %v511
      %v520 = vsel %vm516, %v515, %v509
      %v521 = vlaneseq
      %v522 = vshrl.u32 %v521, 7
      %v523 = vsub.s32 1, %v522
      %v524 = vrot.slane %v288, %v523
      %v525 = vlaneseq
      %v526 = vshrl.u32 %v525, 7
      %v527 = vsub.s32 1, %v526
      %v528 = vrot.slane %v289, %v527
      %v529 = vlaneseq
      %v530 = vshrl.u32 %v529, 7
      %v531 = vsub.s32 1, %v530
      %v532 = vrot.slane %v290, %v531
      %v533 = vlaneseq
      %v534 = vshrl.u32 %v533, 7
      %v535 = vsub.s32 1, %v534
      %v536 = vrot.slane %v291, %v535
      %v537 = vmul.f32 %v520, %v524
      %v538 = vmul.f32 %v519, %v528
      %v539 = vmul.f32 %v518, %v532
      %v540 = vmul.f32 %v517, %v536
      %541 = vrot.lane.b32.xlu0 %v469, 15
      %v542 = vpop.permute.xlu0 %541
      %543 = vrot.lane.b32.xlu0 %v470, 15
      %v544 = vpop.permute.xlu0 %543
      %545 = vrot.lane.b32.xlu0 %v471, 15
      %v546 = vpop.permute.xlu0 %545
      %547 = vrot.lane.b32.xlu0 %v472, 15
      %v548 = vpop.permute.xlu0 %547
      %vm549 = vcmp.lt.s32.totalorder %v482, 15
      %v550 = vsel %vm549, %v546, %v548
      %v551 = vsel %vm549, %v544, %v546
      %v552 = vsel %vm549, %v542, %v544
      %v553 = vsel %vm549, %v548, %v542
      %v554 = vlaneseq
      %v555 = vshrl.u32 %v554, 7
      %v556 = vsub.s32 2, %v555
      %v557 = vrot.slane %v288, %v556
      %v558 = vlaneseq
      %v559 = vshrl.u32 %v558, 7
      %v560 = vsub.s32 2, %v559
      %v561 = vrot.slane %v289, %v560
      %v562 = vlaneseq
      %v563 = vshrl.u32 %v562, 7
      %v564 = vsub.s32 2, %v563
      %v565 = vrot.slane %v290, %v564
      %v566 = vlaneseq
      %v567 = vshrl.u32 %v566, 7
      %v568 = vsub.s32 2, %v567
      %v569 = vrot.slane %v291, %v568
      %v570 = vmul.f32 %v553, %v557
      %v571 = vmul.f32 %v552, %v561
      %v572 = vmul.f32 %v551, %v565
      %v573 = vmul.f32 %v550, %v569
      %574 = vrot.lane.b32.xlu0 %v469, 1
      %v575 = vpop.permute.xlu0 %574
      %576 = vrot.lane.b32.xlu0 %v470, 1
      %v577 = vpop.permute.xlu0 %576
      %578 = vrot.lane.b32.xlu0 %v471, 1
      %v579 = vpop.permute.xlu0 %578
      %580 = vrot.lane.b32.xlu0 %v472, 1
      %v581 = vpop.permute.xlu0 %580
      %vm582 = vcmp.lt.s32.totalorder %v482, 1
      %v583 = vsel %vm582, %v579, %v581
      %v584 = vsel %vm582, %v577, %v579
      %v585 = vsel %vm582, %v575, %v577
      %v586 = vsel %vm582, %v581, %v575
      %v587 = vlaneseq
      %v588 = vshrl.u32 %v587, 7
      %v589 = vsub.s32 3, %v588
      %v590 = vrot.slane %v288, %v589
      %v591 = vlaneseq
      %v592 = vshrl.u32 %v591, 7
      %v593 = vsub.s32 3, %v592
      %v594 = vrot.slane %v289, %v593
      %v595 = vlaneseq
      %v596 = vshrl.u32 %v595, 7
      %v597 = vsub.s32 3, %v596
      %v598 = vrot.slane %v290, %v597
      %v599 = vlaneseq
      %v600 = vshrl.u32 %v599, 7
      %v601 = vsub.s32 3, %v600
      %v602 = vrot.slane %v291, %v601
      %v603 = vmul.f32 %v586, %v590
      %v604 = vmul.f32 %v585, %v594
      %v605 = vmul.f32 %v584, %v598
      %v606 = vmul.f32 %v583, %v602
      %607 = vrot.lane.b32.xlu0 %v469, 127
      %v608 = vpop.permute.xlu0 %607
      %609 = vrot.lane.b32.xlu0 %v470, 127
      %v610 = vpop.permute.xlu0 %609
      %611 = vrot.lane.b32.xlu0 %v471, 127
      %v612 = vpop.permute.xlu0 %611
      %613 = vrot.lane.b32.xlu0 %v472, 127
      %v614 = vpop.permute.xlu0 %613
      %vm615 = vcmp.lt.s32.totalorder %v482, 127
      %v616 = vsel %vm615, %v612, %v614
      %v617 = vsel %vm615, %v610, %v612
      %v618 = vsel %vm615, %v608, %v610
      %v619 = vsel %vm615, %v614, %v608
      %v620 = vlaneseq
      %v621 = vshrl.u32 %v620, 7
      %v622 = vsub.s32 5, %v621
      %v623 = vrot.slane %v288, %v622
      %v624 = vlaneseq
      %v625 = vshrl.u32 %v624, 7
      %v626 = vsub.s32 5, %v625
      %v627 = vrot.slane %v289, %v626
      %v628 = vlaneseq
      %v629 = vshrl.u32 %v628, 7
      %v630 = vsub.s32 5, %v629
      %v631 = vrot.slane %v290, %v630
      %v632 = vlaneseq
      %v633 = vshrl.u32 %v632, 7
      %v634 = vsub.s32 5, %v633
      %v635 = vrot.slane %v291, %v634
      %v636 = vmul.f32 %v618, %v623
      %v637 = vmul.f32 %v617, %v627
      %v638 = vmul.f32 %v616, %v631
      %v639 = vmul.f32 %v619, %v635
      %640 = vrot.lane.b32.xlu0 %v469, 113
      %v641 = vpop.permute.xlu0 %640
      %642 = vrot.lane.b32.xlu0 %v470, 113
      %v643 = vpop.permute.xlu0 %642
      %644 = vrot.lane.b32.xlu0 %v471, 113
      %v645 = vpop.permute.xlu0 %644
      %646 = vrot.lane.b32.xlu0 %v472, 113
      %v647 = vpop.permute.xlu0 %646
      %vm648 = vcmp.lt.s32.totalorder %v482, 113
      %v649 = vsel %vm648, %v645, %v647
      %v650 = vsel %vm648, %v643, %v645
      %v651 = vsel %vm648, %v641, %v643
      %v652 = vsel %vm648, %v647, %v641
      %v653 = vlaneseq
      %v654 = vshrl.u32 %v653, 7
      %v655 = vsub.s32 6, %v654
      %v656 = vrot.slane %v288, %v655
      %v657 = vlaneseq
      %v658 = vshrl.u32 %v657, 7
      %v659 = vsub.s32 6, %v658
      %v660 = vrot.slane %v289, %v659
      %v661 = vlaneseq
      %v662 = vshrl.u32 %v661, 7
      %v663 = vsub.s32 6, %v662
      %v664 = vrot.slane %v290, %v663
      %v665 = vlaneseq
      %v666 = vshrl.u32 %v665, 7
      %v667 = vsub.s32 6, %v666
      %v668 = vrot.slane %v291, %v667
      %v669 = vmul.f32 %v651, %v656
      %v670 = vmul.f32 %v650, %v660
      %v671 = vmul.f32 %v649, %v664
      %v672 = vmul.f32 %v652, %v668
      %673 = vrot.lane.b32.xlu0 %v469, 112
      %v674 = vpop.permute.xlu0 %673
      %675 = vrot.lane.b32.xlu0 %v470, 112
      %v676 = vpop.permute.xlu0 %675
      %677 = vrot.lane.b32.xlu0 %v471, 112
      %v678 = vpop.permute.xlu0 %677
      %679 = vrot.lane.b32.xlu0 %v472, 112
      %v680 = vpop.permute.xlu0 %679
      %vm681 = vcmp.lt.s32.totalorder %v482, 112
      %v682 = vsel %vm681, %v678, %v680
      %v683 = vsel %vm681, %v676, %v678
      %v684 = vsel %vm681, %v674, %v676
      %v685 = vsel %vm681, %v680, %v674
      %v686 = vlaneseq
      %v687 = vshrl.u32 %v686, 7
      %v688 = vsub.s32 7, %v687
      %v689 = vrot.slane %v288, %v688
      %v690 = vlaneseq
      %v691 = vshrl.u32 %v690, 7
      %v692 = vsub.s32 7, %v691
      %v693 = vrot.slane %v289, %v692
      %v694 = vlaneseq
      %v695 = vshrl.u32 %v694, 7
      %v696 = vsub.s32 7, %v695
      %v697 = vrot.slane %v290, %v696
      %v698 = vlaneseq
      %v699 = vshrl.u32 %v698, 7
      %v700 = vsub.s32 7, %v699
      %v701 = vrot.slane %v291, %v700
      %v702 = vmul.f32 %v684, %v689
      %v703 = vmul.f32 %v683, %v693
      %v704 = vmul.f32 %v682, %v697
      %v705 = vmul.f32 %v685, %v701
      %706 = vrot.lane.b32.xlu0 %v469, 111
      %v707 = vpop.permute.xlu0 %706
      %708 = vrot.lane.b32.xlu0 %v470, 111
      %v709 = vpop.permute.xlu0 %708
      %710 = vrot.lane.b32.xlu0 %v471, 111
      %v711 = vpop.permute.xlu0 %710
      %712 = vrot.lane.b32.xlu0 %v472, 111
      %v713 = vpop.permute.xlu0 %712
      %vm714 = vcmp.lt.s32.totalorder %v482, 111
      %v715 = vsel %vm714, %v711, %v713
      %v716 = vsel %vm714, %v709, %v711
      %v717 = vsel %vm714, %v707, %v709
      %v718 = vsel %vm714, %v713, %v707
      %v719 = vlaneseq
      %v720 = vshrl.u32 %v719, 7
      %v721 = vsub.s32 0, %v720
      %v722 = vrot.slane %v292, %v721
      %v723 = vlaneseq
      %v724 = vshrl.u32 %v723, 7
      %v725 = vsub.s32 0, %v724
      %v726 = vrot.slane %v293, %v725
      %v727 = vlaneseq
      %v728 = vshrl.u32 %v727, 7
      %v729 = vsub.s32 0, %v728
      %v730 = vrot.slane %v294, %v729
      %v731 = vlaneseq
      %v732 = vshrl.u32 %v731, 7
      %v733 = vsub.s32 0, %v732
      %v734 = vrot.slane %v295, %v733
      %v735 = vmul.f32 %v717, %v722
      %v736 = vmul.f32 %v716, %v726
      %v737 = vmul.f32 %v715, %v730
      %v738 = vmul.f32 %v718, %v734
      %v739 = vpack.c.bf16 %v504, %v504
      %v740 = vpack.c.bf16 %v505, %v505
      %v741 = vpack.c.bf16 %v506, %v506
      %v742 = vpack.c.bf16 %v507, %v507
      %v747 = vunpack.c.l.b16 %v739
      %v748 = vunpack.c.l.b16 %v740
      %v749 = vunpack.c.l.b16 %v741
      %v750 = vunpack.c.l.b16 %v742
      %v751 = vpack.c.b16 %v748, %v747
      %v752 = vpack.c.b16 %v750, %v749
      %755 = vst [vmem:[#allocation2] sm:$0x33] %v751
      %756 = vst [vmem:[#allocation2 + $0x8] sm:$0x33] %v752
      %v757 = vpack.c.bf16 %v537, %v537
      %v758 = vpack.c.bf16 %v538, %v538
      %v759 = vpack.c.bf16 %v539, %v539
      %v760 = vpack.c.bf16 %v540, %v540
      %v765 = vunpack.c.l.b16 %v757
      %v766 = vunpack.c.l.b16 %v758
      %v767 = vunpack.c.l.b16 %v759
      %v768 = vunpack.c.l.b16 %v760
      %v769 = vpack.c.b16 %v766, %v765
      %v770 = vpack.c.b16 %v768, %v767
      %v771 = vrot.slane %v769, 6
      %v772 = vrot.slane %v770, 6
      %775 = vst [vmem:[#allocation2] sm:$0xcc] %v771
      %776 = vst [vmem:[#allocation2 + $0x8] sm:$0xcc] %v772
      %v777 = vpack.c.bf16 %v570, %v570
      %v778 = vpack.c.bf16 %v571, %v571
      %v779 = vpack.c.bf16 %v572, %v572
      %v780 = vpack.c.bf16 %v573, %v573
      %v785 = vunpack.c.l.b16 %v777
      %v786 = vunpack.c.l.b16 %v778
      %v787 = vunpack.c.l.b16 %v779
      %v788 = vunpack.c.l.b16 %v780
      %v789 = vpack.c.b16 %v786, %v785
      %v790 = vpack.c.b16 %v788, %v787
      %793 = vst [vmem:[#allocation2 + $0x10] sm:$0x33] %v789
      %794 = vst [vmem:[#allocation2 + $0x18] sm:$0x33] %v790
      %v795 = vpack.c.bf16 %v603, %v603
      %v796 = vpack.c.bf16 %v604, %v604
      %v797 = vpack.c.bf16 %v605, %v605
      %v798 = vpack.c.bf16 %v606, %v606
      %v803 = vunpack.c.l.b16 %v795
      %v804 = vunpack.c.l.b16 %v796
      %v805 = vunpack.c.l.b16 %v797
      %v806 = vunpack.c.l.b16 %v798
      %v807 = vpack.c.b16 %v804, %v803
      %v808 = vpack.c.b16 %v806, %v805
      %v809 = vrot.slane %v807, 6
      %v810 = vrot.slane %v808, 6
      %813 = vst [vmem:[#allocation2 + $0x10] sm:$0xcc] %v809
      %814 = vst [vmem:[#allocation2 + $0x18] sm:$0xcc] %v810
      %v815 = vpack.c.bf16 %v469, %v469
      %v816 = vpack.c.bf16 %v470, %v470
      %v817 = vpack.c.bf16 %v471, %v471
      %v818 = vpack.c.bf16 %v472, %v472
      %v823 = vunpack.c.l.b16 %v815
      %v824 = vunpack.c.l.b16 %v816
      %v825 = vunpack.c.l.b16 %v817
      %v826 = vunpack.c.l.b16 %v818
      %v827 = vpack.c.b16 %v824, %v823
      %v828 = vpack.c.b16 %v826, %v825
      %831 = vst [vmem:[#allocation2 + $0x20] sm:$0x33] %v827
      %832 = vst [vmem:[#allocation2 + $0x28] sm:$0x33] %v828
      %v833 = vpack.c.bf16 %v636, %v636
      %v834 = vpack.c.bf16 %v637, %v637
      %v835 = vpack.c.bf16 %v638, %v638
      %v836 = vpack.c.bf16 %v639, %v639
      %v841 = vunpack.c.l.b16 %v833
      %v842 = vunpack.c.l.b16 %v834
      %v843 = vunpack.c.l.b16 %v835
      %v844 = vunpack.c.l.b16 %v836
      %v845 = vpack.c.b16 %v842, %v841
      %v846 = vpack.c.b16 %v844, %v843
      %v847 = vrot.slane %v845, 6
      %v848 = vrot.slane %v846, 6
      %851 = vst [vmem:[#allocation2 + $0x20] sm:$0xcc] %v847
      %852 = vst [vmem:[#allocation2 + $0x28] sm:$0xcc] %v848
      %v853 = vpack.c.bf16 %v669, %v669
      %v854 = vpack.c.bf16 %v670, %v670
      %v855 = vpack.c.bf16 %v671, %v671
      %v856 = vpack.c.bf16 %v672, %v672
      %v861 = vunpack.c.l.b16 %v853
      %v862 = vunpack.c.l.b16 %v854
      %v863 = vunpack.c.l.b16 %v855
      %v864 = vunpack.c.l.b16 %v856
      %v865 = vpack.c.b16 %v862, %v861
      %v866 = vpack.c.b16 %v864, %v863
      %869 = vst [vmem:[#allocation2 + $0x30] sm:$0x33] %v865
      %870 = vst [vmem:[#allocation2 + $0x38] sm:$0x33] %v866
      %v871 = vpack.c.bf16 %v702, %v702
      %v872 = vpack.c.bf16 %v703, %v703
      %v873 = vpack.c.bf16 %v704, %v704
      %v874 = vpack.c.bf16 %v705, %v705
      %v879 = vunpack.c.l.b16 %v871
      %v880 = vunpack.c.l.b16 %v872
      %v881 = vunpack.c.l.b16 %v873
      %v882 = vunpack.c.l.b16 %v874
      %v883 = vpack.c.b16 %v880, %v879
      %v884 = vpack.c.b16 %v882, %v881
      %v885 = vrot.slane %v883, 6
      %v886 = vrot.slane %v884, 6
      %889 = vst [vmem:[#allocation2 + $0x30] sm:$0xcc] %v885
      %890 = vst [vmem:[#allocation2 + $0x38] sm:$0xcc] %v886
      %v891 = vpack.c.bf16 %v735, %v735
      %v892 = vpack.c.bf16 %v736, %v736
      %v893 = vpack.c.bf16 %v737, %v737
      %v894 = vpack.c.bf16 %v738, %v738
      %v899 = vunpack.c.l.b16 %v891
      %v900 = vunpack.c.l.b16 %v892
      %v901 = vunpack.c.l.b16 %v893
      %v902 = vunpack.c.l.b16 %v894
      %v903 = vpack.c.b16 %v900, %v899
      %v904 = vpack.c.b16 %v902, %v901
      %907 = vst [vmem:[#allocation2 + $0x40] sm:$0x33] %v903
      %908 = vst [vmem:[#allocation2 + $0x48] sm:$0x33] %v904
      %v909 = vld [vmem:[%s1] sm:$0x3]
      %v910 = vld [vmem:[#allocation2] sm:$0xff]
      %v911 = vld [vmem:[#allocation2 + $0x8] sm:$0xff]
      %v912 = vld [vmem:[#allocation2 + $0x10] sm:$0xff]
      %v913 = vld [vmem:[#allocation2 + $0x18] sm:$0xff]
      %v914 = vld [vmem:[#allocation2 + $0x20] sm:$0xff]
      %v915 = vld [vmem:[#allocation2 + $0x28] sm:$0xff]
      %v916 = vld [vmem:[#allocation2 + $0x30] sm:$0xff]
      %v917 = vld [vmem:[#allocation2 + $0x38] sm:$0xff]
      %v918 = vld [vmem:[#allocation2 + $0x40] sm:$0x33]
      %v919 = vld [vmem:[#allocation2 + $0x48] sm:$0x33]
      %v920 = vld [vmem:[%s2] sm:$0xf]
      %922 = vset.pattern.permute.xlu0 0
      %923 = vperm.xlu0 %922, %v920
      %v924 = vpop.permute.xlu0 %923
      %v936 = vunpack.c.l.b16 %v910
      %v937 = vunpack.c.h.b16 %v910
      %v938 = vunpack.c.l.b16 %v911
      %v939 = vunpack.c.h.b16 %v911
      %v940 = vunpack.c.l.b16 %v912
      %v941 = vunpack.c.h.b16 %v912
      %v942 = vunpack.c.l.b16 %v913
      %v943 = vunpack.c.h.b16 %v913
      %v944 = vunpack.c.l.b16 %v914
      %v945 = vunpack.c.h.b16 %v914
      %v946 = vunpack.c.l.b16 %v915
      %v947 = vunpack.c.h.b16 %v915
      %v948 = vunpack.c.l.b16 %v916
      %v949 = vunpack.c.h.b16 %v916
      %v950 = vunpack.c.l.b16 %v917
      %v951 = vunpack.c.h.b16 %v917
      %v952 = vunpack.c.l.b16 %v918
      %v953 = vunpack.c.h.b16 %v918
      %v954 = vunpack.c.l.b16 %v919
      %v955 = vunpack.c.h.b16 %v919
      %v956 = vpack.c.b16 %v940, %v936
      %v957 = vpack.c.b16 %v941, %v937
      %v958 = vpack.c.b16 %v942, %v938
      %v959 = vpack.c.b16 %v943, %v939
      %v960 = vpack.c.b16 %v948, %v944
      %v961 = vpack.c.b16 %v949, %v945
      %v962 = vpack.c.b16 %v950, %v946
      %v963 = vpack.c.b16 %v951, %v947
      %v964 = vpack.c.b16 %v952, %v952
      %v965 = vpack.c.b16 %v953, %v953
      %v966 = vpack.c.b16 %v954, %v954
      %v967 = vpack.c.b16 %v955, %v955
      %vm976 = vcmask 293888
      %v978 = vsel %vm976, %v909, 0
      %vm980 = vcmask 1041408
      %v982 = vsel %vm980, %v964, 0
      %v985 = vsel %vm980, %v965, 0
      %v988 = vsel %vm980, %v966, 0
      %v991 = vsel %vm980, %v967, 0
      %993 = vmatprep.subr.bf16.mxu0 %v957
      %994 = vmatpush1.bf16.msra.mxu0 %v956
      %995 = vmatprep.subr.bf16.mxu0 %v961
      %996 = vmatpush1.bf16.msra.mxu0 %v960
      %997 = vmatprep.subr.bf16.mxu0 %v985
      %998 = vmatpush1.bf16.msra.mxu0 %v982
      %999 = vmatprep.subr.bf16.mxu0 0
      %1000 = vmatpush1.bf16.msra.mxu0 0
      %1001 = vmatprep.subr.bf16.mxu0 0
      %1002 = vmatpush1.bf16.msra.mxu0 0
      %1003 = vmatprep.subr.bf16.mxu0 0
      %1004 = vmatpush1.bf16.msra.mxu0 0
      %1005 = vmatprep.subr.bf16.mxu0 0
      %1006 = vmatpush1.bf16.msra.mxu0 0
      %1007 = vmatprep.subr.bf16.mxu0 0
      %1008 = vmatpush1.bf16.msra.mxu0 0
      %1009 = vmatprep.subr.bf16.mxu0 0
      %1010 = vmatpush1.bf16.msra.mxu0 0
      %1011 = vmatprep.subr.bf16.mxu0 0
      %1012 = vmatpush1.bf16.msra.mxu0 0
      %1013 = vmatprep.subr.bf16.mxu0 0
      %1014 = vmatpush1.bf16.msra.mxu0 0
      %1015 = vmatprep.subr.bf16.mxu0 0
      %1016 = vmatpush1.bf16.msra.mxu0 0
      %1017 = vmatprep.subr.bf16.mxu0 0
      %1018 = vmatpush1.bf16.msra.mxu0 0
      %1019 = vmatprep.subr.bf16.mxu0 0
      %1020 = vmatpush1.bf16.msra.mxu0 0
      %1021 = vmatprep.subr.bf16.mxu0 0
      %1022 = vmatpush1.bf16.msra.mxu0 0
      %1023 = vmatprep.subr.bf16.mxu0 0
      %1024 = vmatpush1.bf16.msra.mxu0 0
      %1025 = vmatprep.mubr.bf16.mxu0 0
      %1026 = vmatmul.mubr.bf16.gmra.mrb[0].mxu0 %v978
      %v1027 = vpop.f32.mrb[0].mxu0
      %v1028 = vadd.f32 %v924, %v1027
      %v1029 = vpop.f32.mrb[0].mxu0
      %v1030 = vadd.f32 %v924, %v1029
      %v1031 = vpop.f32.mrb[0].mxu0
      %v1032 = vpop.f32.mrb[0].mxu0
      %1033 = vdwg.mxu0
      %1034 = vmatprep.subr.bf16.mxu0 %v959
      %1035 = vmatpush1.bf16.msra.mxu0 %v958
      %1036 = vmatprep.subr.bf16.mxu0 %v963
      %1037 = vmatpush1.bf16.msra.mxu0 %v962
      %1038 = vmatprep.subr.bf16.mxu0 %v991
      %1039 = vmatpush1.bf16.msra.mxu0 %v988
      %1040 = vmatprep.subr.bf16.mxu0 0
      %1041 = vmatpush1.bf16.msra.mxu0 0
      %1042 = vmatprep.subr.bf16.mxu0 0
      %1043 = vmatpush1.bf16.msra.mxu0 0
      %1044 = vmatprep.subr.bf16.mxu0 0
      %1045 = vmatpush1.bf16.msra.mxu0 0
      %1046 = vmatprep.subr.bf16.mxu0 0
      %1047 = vmatpush1.bf16.msra.mxu0 0
      %1048 = vmatprep.subr.bf16.mxu0 0
      %1049 = vmatpush1.bf16.msra.mxu0 0
      %1050 = vmatprep.subr.bf16.mxu0 0
      %1051 = vmatpush1.bf16.msra.mxu0 0
      %1052 = vmatprep.subr.bf16.mxu0 0
      %1053 = vmatpush1.bf16.msra.mxu0 0
      %1054 = vmatprep.subr.bf16.mxu0 0
      %1055 = vmatpush1.bf16.msra.mxu0 0
      %1056 = vmatprep.subr.bf16.mxu0 0
      %1057 = vmatpush1.bf16.msra.mxu0 0
      %1058 = vmatprep.subr.bf16.mxu0 0
      %1059 = vmatpush1.bf16.msra.mxu0 0
      %1060 = vmatprep.subr.bf16.mxu0 0
      %1061 = vmatpush1.bf16.msra.mxu0 0
      %1062 = vmatprep.subr.bf16.mxu0 0
      %1063 = vmatpush1.bf16.msra.mxu0 0
      %1064 = vmatprep.subr.bf16.mxu0 0
      %1065 = vmatpush1.bf16.msra.mxu0 0
      %1066 = vmatprep.mubr.bf16.mxu0 0
      %1067 = vmatmul.mubr.bf16.gmra.mrb[0].mxu0 %v978
      %v1068 = vpop.f32.mrb[0].mxu0
      %v1069 = vadd.f32 %v924, %v1068
      %v1070 = vpop.f32.mrb[0].mxu0
      %v1071 = vadd.f32 %v924, %v1070
      %v1072 = vpop.f32.mrb[0].mxu0
      %v1073 = vpop.f32.mrb[0].mxu0
      %1074 = vdwg.mxu0
      %vm1075 = vcmp.ge.f32.partialorder %v1028, 0.0
      %vm1076 = vcmp.ge.f32.partialorder %v1030, 0.0
      %vm1077 = vcmp.ge.f32.partialorder %v1069, 0.0
      %vm1078 = vcmp.ge.f32.partialorder %v1071, 0.0
      %v1079 = vmul.f32 %v1028, 0.2
      %v1080 = vmul.f32 %v1030, 0.2
      %v1081 = vmul.f32 %v1069, 0.2
      %v1082 = vmul.f32 %v1071, 0.2
      %v1083 = vsel %vm1075, %v1028, %v1079
      %v1084 = vsel %vm1076, %v1030, %v1080
      %v1085 = vsel %vm1077, %v1069, %v1081
      %v1086 = vsel %vm1078, %v1071, %v1082
      %1087 = vrot.lane.b32.xlu0 %v1083, 17
      %v1088 = vpop.permute.xlu0 %1087
      %1089 = vrot.lane.b32.xlu0 %v1084, 17
      %v1090 = vpop.permute.xlu0 %1089
      %1091 = vrot.lane.b32.xlu0 %v1085, 17
      %v1092 = vpop.permute.xlu0 %1091
      %1093 = vrot.lane.b32.xlu0 %v1086, 17
      %v1094 = vpop.permute.xlu0 %1093
      %v1095 = vsel %vm483, %v1092, %v1094
      %v1096 = vsel %vm483, %v1090, %v1092
      %v1097 = vsel %vm483, %v1088, %v1090
      %v1098 = vsel %vm483, %v1094, %v1088
      %v1099 = vmul.f32 %v1098, %v491
      %v1100 = vmul.f32 %v1097, %v495
      %v1101 = vmul.f32 %v1096, %v499
      %v1102 = vmul.f32 %v1095, %v503
      %1103 = vrot.lane.b32.xlu0 %v1083, 16
      %v1104 = vpop.permute.xlu0 %1103
      %1105 = vrot.lane.b32.xlu0 %v1084, 16
      %v1106 = vpop.permute.xlu0 %1105
      %1107 = vrot.lane.b32.xlu0 %v1085, 16
      %v1108 = vpop.permute.xlu0 %1107
      %1109 = vrot.lane.b32.xlu0 %v1086, 16
      %v1110 = vpop.permute.xlu0 %1109
      %v1111 = vsel %vm516, %v1108, %v1110
      %v1112 = vsel %vm516, %v1106, %v1108
      %v1113 = vsel %vm516, %v1104, %v1106
      %v1114 = vsel %vm516, %v1110, %v1104
      %v1115 = vmul.f32 %v1114, %v524
      %v1116 = vmul.f32 %v1113, %v528
      %v1117 = vmul.f32 %v1112, %v532
      %v1118 = vmul.f32 %v1111, %v536
      %1119 = vrot.lane.b32.xlu0 %v1083, 15
      %v1120 = vpop.permute.xlu0 %1119
      %1121 = vrot.lane.b32.xlu0 %v1084, 15
      %v1122 = vpop.permute.xlu0 %1121
      %1123 = vrot.lane.b32.xlu0 %v1085, 15
      %v1124 = vpop.permute.xlu0 %1123
      %1125 = vrot.lane.b32.xlu0 %v1086, 15
      %v1126 = vpop.permute.xlu0 %1125
      %v1127 = vsel %vm549, %v1124, %v1126
      %v1128 = vsel %vm549, %v1122, %v1124
      %v1129 = vsel %vm549, %v1120, %v1122
      %v1130 = vsel %vm549, %v1126, %v1120
      %v1131 = vmul.f32 %v1130, %v557
      %v1132 = vmul.f32 %v1129, %v561
      %v1133 = vmul.f32 %v1128, %v565
      %v1134 = vmul.f32 %v1127, %v569
      %1135 = vrot.lane.b32.xlu0 %v1083, 1
      %v1136 = vpop.permute.xlu0 %1135
      %1137 = vrot.lane.b32.xlu0 %v1084, 1
      %v1138 = vpop.permute.xlu0 %1137
      %1139 = vrot.lane.b32.xlu0 %v1085, 1
      %v1140 = vpop.permute.xlu0 %1139
      %1141 = vrot.lane.b32.xlu0 %v1086, 1
      %v1142 = vpop.permute.xlu0 %1141
      %v1143 = vsel %vm582, %v1140, %v1142
      %v1144 = vsel %vm582, %v1138, %v1140
      %v1145 = vsel %vm582, %v1136, %v1138
      %v1146 = vsel %vm582, %v1142, %v1136
      %v1147 = vmul.f32 %v1146, %v590
      %v1148 = vmul.f32 %v1145, %v594
      %v1149 = vmul.f32 %v1144, %v598
      %v1150 = vmul.f32 %v1143, %v602
      %1151 = vrot.lane.b32.xlu0 %v1083, 127
      %v1152 = vpop.permute.xlu0 %1151
      %1153 = vrot.lane.b32.xlu0 %v1084, 127
      %v1154 = vpop.permute.xlu0 %1153
      %1155 = vrot.lane.b32.xlu0 %v1085, 127
      %v1156 = vpop.permute.xlu0 %1155
      %1157 = vrot.lane.b32.xlu0 %v1086, 127
      %v1158 = vpop.permute.xlu0 %1157
      %v1159 = vsel %vm615, %v1156, %v1158
      %v1160 = vsel %vm615, %v1154, %v1156
      %v1161 = vsel %vm615, %v1152, %v1154
      %v1162 = vsel %vm615, %v1158, %v1152
      %v1163 = vmul.f32 %v1161, %v623
      %v1164 = vmul.f32 %v1160, %v627
      %v1165 = vmul.f32 %v1159, %v631
      %v1166 = vmul.f32 %v1162, %v635
      %1167 = vrot.lane.b32.xlu0 %v1083, 113
      %v1168 = vpop.permute.xlu0 %1167
      %1169 = vrot.lane.b32.xlu0 %v1084, 113
      %v1170 = vpop.permute.xlu0 %1169
      %1171 = vrot.lane.b32.xlu0 %v1085, 113
      %v1172 = vpop.permute.xlu0 %1171
      %1173 = vrot.lane.b32.xlu0 %v1086, 113
      %v1174 = vpop.permute.xlu0 %1173
      %v1175 = vsel %vm648, %v1172, %v1174
      %v1176 = vsel %vm648, %v1170, %v1172
      %v1177 = vsel %vm648, %v1168, %v1170
      %v1178 = vsel %vm648, %v1174, %v1168
      %v1179 = vmul.f32 %v1177, %v656
      %v1180 = vmul.f32 %v1176, %v660
      %v1181 = vmul.f32 %v1175, %v664
      %v1182 = vmul.f32 %v1178, %v668
      %1183 = vrot.lane.b32.xlu0 %v1083, 112
      %v1184 = vpop.permute.xlu0 %1183
      %1185 = vrot.lane.b32.xlu0 %v1084, 112
      %v1186 = vpop.permute.xlu0 %1185
      %1187 = vrot.lane.b32.xlu0 %v1085, 112
      %v1188 = vpop.permute.xlu0 %1187
      %1189 = vrot.lane.b32.xlu0 %v1086, 112
      %v1190 = vpop.permute.xlu0 %1189
      %v1191 = vsel %vm681, %v1188, %v1190
      %v1192 = vsel %vm681, %v1186, %v1188
      %v1193 = vsel %vm681, %v1184, %v1186
      %v1194 = vsel %vm681, %v1190, %v1184
      %v1195 = vmul.f32 %v1193, %v689
      %v1196 = vmul.f32 %v1192, %v693
      %v1197 = vmul.f32 %v1191, %v697
      %v1198 = vmul.f32 %v1194, %v701
      %1199 = vrot.lane.b32.xlu0 %v1083, 111
      %v1200 = vpop.permute.xlu0 %1199
      %1201 = vrot.lane.b32.xlu0 %v1084, 111
      %v1202 = vpop.permute.xlu0 %1201
      %1203 = vrot.lane.b32.xlu0 %v1085, 111
      %v1204 = vpop.permute.xlu0 %1203
      %1205 = vrot.lane.b32.xlu0 %v1086, 111
      %v1206 = vpop.permute.xlu0 %1205
      %v1207 = vsel %vm714, %v1204, %v1206
      %v1208 = vsel %vm714, %v1202, %v1204
      %v1209 = vsel %vm714, %v1200, %v1202
      %v1210 = vsel %vm714, %v1206, %v1200
      %v1211 = vmul.f32 %v1209, %v722
      %v1212 = vmul.f32 %v1208, %v726
      %v1213 = vmul.f32 %v1207, %v730
      %v1214 = vmul.f32 %v1210, %v734
      %v1215 = vpack.c.bf16 %v1099, %v1099
      %v1216 = vpack.c.bf16 %v1100, %v1100
      %v1217 = vpack.c.bf16 %v1101, %v1101
      %v1218 = vpack.c.bf16 %v1102, %v1102
      %v1223 = vunpack.c.l.b16 %v1215
      %v1224 = vunpack.c.l.b16 %v1216
      %v1225 = vunpack.c.l.b16 %v1217
      %v1226 = vunpack.c.l.b16 %v1218
      %v1227 = vpack.c.b16 %v1224, %v1223
      %v1228 = vpack.c.b16 %v1226, %v1225
      %1231 = vst [vmem:[#allocation2] sm:$0x33] %v1227
      %1232 = vst [vmem:[#allocation2 + $0x8] sm:$0x33] %v1228
      %v1233 = vpack.c.bf16 %v1115, %v1115
      %v1234 = vpack.c.bf16 %v1116, %v1116
      %v1235 = vpack.c.bf16 %v1117, %v1117
      %v1236 = vpack.c.bf16 %v1118, %v1118
      %v1241 = vunpack.c.l.b16 %v1233
      %v1242 = vunpack.c.l.b16 %v1234
      %v1243 = vunpack.c.l.b16 %v1235
      %v1244 = vunpack.c.l.b16 %v1236
      %v1245 = vpack.c.b16 %v1242, %v1241
      %v1246 = vpack.c.b16 %v1244, %v1243
      %v1247 = vrot.slane %v1245, 6
      %v1248 = vrot.slane %v1246, 6
      %1251 = vst [vmem:[#allocation2] sm:$0xcc] %v1247
      %1252 = vst [vmem:[#allocation2 + $0x8] sm:$0xcc] %v1248
      %v1253 = vpack.c.bf16 %v1131, %v1131
      %v1254 = vpack.c.bf16 %v1132, %v1132
      %v1255 = vpack.c.bf16 %v1133, %v1133
      %v1256 = vpack.c.bf16 %v1134, %v1134
      %v1261 = vunpack.c.l.b16 %v1253
      %v1262 = vunpack.c.l.b16 %v1254
      %v1263 = vunpack.c.l.b16 %v1255
      %v1264 = vunpack.c.l.b16 %v1256
      %v1265 = vpack.c.b16 %v1262, %v1261
      %v1266 = vpack.c.b16 %v1264, %v1263
      %1269 = vst [vmem:[#allocation2 + $0x10] sm:$0x33] %v1265
      %1270 = vst [vmem:[#allocation2 + $0x18] sm:$0x33] %v1266
      %v1271 = vpack.c.bf16 %v1147, %v1147
      %v1272 = vpack.c.bf16 %v1148, %v1148
      %v1273 = vpack.c.bf16 %v1149, %v1149
      %v1274 = vpack.c.bf16 %v1150, %v1150
      %v1279 = vunpack.c.l.b16 %v1271
      %v1280 = vunpack.c.l.b16 %v1272
      %v1281 = vunpack.c.l.b16 %v1273
      %v1282 = vunpack.c.l.b16 %v1274
      %v1283 = vpack.c.b16 %v1280, %v1279
      %v1284 = vpack.c.b16 %v1282, %v1281
      %v1285 = vrot.slane %v1283, 6
      %v1286 = vrot.slane %v1284, 6
      %1289 = vst [vmem:[#allocation2 + $0x10] sm:$0xcc] %v1285
      %1290 = vst [vmem:[#allocation2 + $0x18] sm:$0xcc] %v1286
      %v1291 = vpack.c.bf16 %v1083, %v1083
      %v1292 = vpack.c.bf16 %v1084, %v1084
      %v1293 = vpack.c.bf16 %v1085, %v1085
      %v1294 = vpack.c.bf16 %v1086, %v1086
      %v1299 = vunpack.c.l.b16 %v1291
      %v1300 = vunpack.c.l.b16 %v1292
      %v1301 = vunpack.c.l.b16 %v1293
      %v1302 = vunpack.c.l.b16 %v1294
      %v1303 = vpack.c.b16 %v1300, %v1299
      %v1304 = vpack.c.b16 %v1302, %v1301
      %1307 = vst [vmem:[#allocation2 + $0x20] sm:$0x33] %v1303
      %1308 = vst [vmem:[#allocation2 + $0x28] sm:$0x33] %v1304
      %v1309 = vpack.c.bf16 %v1163, %v1163
      %v1310 = vpack.c.bf16 %v1164, %v1164
      %v1311 = vpack.c.bf16 %v1165, %v1165
      %v1312 = vpack.c.bf16 %v1166, %v1166
      %v1317 = vunpack.c.l.b16 %v1309
      %v1318 = vunpack.c.l.b16 %v1310
      %v1319 = vunpack.c.l.b16 %v1311
      %v1320 = vunpack.c.l.b16 %v1312
      %v1321 = vpack.c.b16 %v1318, %v1317
      %v1322 = vpack.c.b16 %v1320, %v1319
      %v1323 = vrot.slane %v1321, 6
      %v1324 = vrot.slane %v1322, 6
      %1327 = vst [vmem:[#allocation2 + $0x20] sm:$0xcc] %v1323
      %1328 = vst [vmem:[#allocation2 + $0x28] sm:$0xcc] %v1324
      %v1329 = vpack.c.bf16 %v1179, %v1179
      %v1330 = vpack.c.bf16 %v1180, %v1180
      %v1331 = vpack.c.bf16 %v1181, %v1181
      %v1332 = vpack.c.bf16 %v1182, %v1182
      %v1337 = vunpack.c.l.b16 %v1329
      %v1338 = vunpack.c.l.b16 %v1330
      %v1339 = vunpack.c.l.b16 %v1331
      %v1340 = vunpack.c.l.b16 %v1332
      %v1341 = vpack.c.b16 %v1338, %v1337
      %v1342 = vpack.c.b16 %v1340, %v1339
      %1345 = vst [vmem:[#allocation2 + $0x30] sm:$0x33] %v1341
      %1346 = vst [vmem:[#allocation2 + $0x38] sm:$0x33] %v1342
      %v1347 = vpack.c.bf16 %v1195, %v1195
      %v1348 = vpack.c.bf16 %v1196, %v1196
      %v1349 = vpack.c.bf16 %v1197, %v1197
      %v1350 = vpack.c.bf16 %v1198, %v1198
      %v1355 = vunpack.c.l.b16 %v1347
      %v1356 = vunpack.c.l.b16 %v1348
      %v1357 = vunpack.c.l.b16 %v1349
      %v1358 = vunpack.c.l.b16 %v1350
      %v1359 = vpack.c.b16 %v1356, %v1355
      %v1360 = vpack.c.b16 %v1358, %v1357
      %v1361 = vrot.slane %v1359, 6
      %v1362 = vrot.slane %v1360, 6
      %1365 = vst [vmem:[#allocation2 + $0x30] sm:$0xcc] %v1361
      %1366 = vst [vmem:[#allocation2 + $0x38] sm:$0xcc] %v1362
      %v1367 = vpack.c.bf16 %v1211, %v1211
      %v1368 = vpack.c.bf16 %v1212, %v1212
      %v1369 = vpack.c.bf16 %v1213, %v1213
      %v1370 = vpack.c.bf16 %v1214, %v1214
      %v1375 = vunpack.c.l.b16 %v1367
      %v1376 = vunpack.c.l.b16 %v1368
      %v1377 = vunpack.c.l.b16 %v1369
      %v1378 = vunpack.c.l.b16 %v1370
      %v1379 = vpack.c.b16 %v1376, %v1375
      %v1380 = vpack.c.b16 %v1378, %v1377
      %1383 = vst [vmem:[#allocation2 + $0x40] sm:$0x33] %v1379
      %1384 = vst [vmem:[#allocation2 + $0x48] sm:$0x33] %v1380
      %v1385 = vld [vmem:[%s3] sm:$0xf]
      %v1386 = vld [vmem:[#allocation2] sm:$0xff]
      %v1387 = vld [vmem:[#allocation2 + $0x8] sm:$0xff]
      %v1388 = vld [vmem:[#allocation2 + $0x10] sm:$0xff]
      %v1389 = vld [vmem:[#allocation2 + $0x18] sm:$0xff]
      %v1390 = vld [vmem:[#allocation2 + $0x20] sm:$0xff]
      %v1391 = vld [vmem:[#allocation2 + $0x28] sm:$0xff]
      %v1392 = vld [vmem:[#allocation2 + $0x30] sm:$0xff]
      %v1393 = vld [vmem:[#allocation2 + $0x38] sm:$0xff]
      %v1394 = vld [vmem:[#allocation2 + $0x40] sm:$0x33]
      %v1395 = vld [vmem:[#allocation2 + $0x48] sm:$0x33]
      %v1396 = vld [vmem:[%s4] sm:$0xff]
      %1398 = vset.pattern.permute.xlu0 0
      %1399 = vperm.xlu0 %1398, %v1396
      %v1400 = vpop.permute.xlu0 %1399
      %v1412 = vunpack.c.l.b16 %v1386
      %v1413 = vunpack.c.h.b16 %v1386
      %v1414 = vunpack.c.l.b16 %v1387
      %v1415 = vunpack.c.h.b16 %v1387
      %v1416 = vunpack.c.l.b16 %v1388
      %v1417 = vunpack.c.h.b16 %v1388
      %v1418 = vunpack.c.l.b16 %v1389
      %v1419 = vunpack.c.h.b16 %v1389
      %v1420 = vunpack.c.l.b16 %v1390
      %v1421 = vunpack.c.h.b16 %v1390
      %v1422 = vunpack.c.l.b16 %v1391
      %v1423 = vunpack.c.h.b16 %v1391
      %v1424 = vunpack.c.l.b16 %v1392
      %v1425 = vunpack.c.h.b16 %v1392
      %v1426 = vunpack.c.l.b16 %v1393
      %v1427 = vunpack.c.h.b16 %v1393
      %v1428 = vunpack.c.l.b16 %v1394
      %v1429 = vunpack.c.h.b16 %v1394
      %v1430 = vunpack.c.l.b16 %v1395
      %v1431 = vunpack.c.h.b16 %v1395
      %v1432 = vpack.c.b16 %v1416, %v1412
      %v1433 = vpack.c.b16 %v1417, %v1413
      %v1434 = vpack.c.b16 %v1418, %v1414
      %v1435 = vpack.c.b16 %v1419, %v1415
      %v1436 = vpack.c.b16 %v1424, %v1420
      %v1437 = vpack.c.b16 %v1425, %v1421
      %v1438 = vpack.c.b16 %v1426, %v1422
      %v1439 = vpack.c.b16 %v1427, %v1423
      %v1440 = vpack.c.b16 %v1428, %v1428
      %v1441 = vpack.c.b16 %v1429, %v1429
      %v1442 = vpack.c.b16 %v1430, %v1430
      %v1443 = vpack.c.b16 %v1431, %v1431
      %v1453 = vsel %vm976, %v1385, 0
      %v1456 = vsel %vm980, %v1440, 0
      %v1459 = vsel %vm980, %v1441, 0
      %v1462 = vsel %vm980, %v1442, 0
      %v1465 = vsel %vm980, %v1443, 0
      %1467 = vmatprep.subr.bf16.mxu0 %v1433
      %1468 = vmatpush1.bf16.msra.mxu0 %v1432
      %1469 = vmatprep.subr.bf16.mxu0 %v1437
      %1470 = vmatpush1.bf16.msra.mxu0 %v1436
      %1471 = vmatprep.subr.bf16.mxu0 %v1459
      %1472 = vmatpush1.bf16.msra.mxu0 %v1456
      %1473 = vmatprep.subr.bf16.mxu0 0
      %1474 = vmatpush1.bf16.msra.mxu0 0
      %1475 = vmatprep.subr.bf16.mxu0 0
      %1476 = vmatpush1.bf16.msra.mxu0 0
      %1477 = vmatprep.subr.bf16.mxu0 0
      %1478 = vmatpush1.bf16.msra.mxu0 0
      %1479 = vmatprep.subr.bf16.mxu0 0
      %1480 = vmatpush1.bf16.msra.mxu0 0
      %1481 = vmatprep.subr.bf16.mxu0 0
      %1482 = vmatpush1.bf16.msra.mxu0 0
      %1483 = vmatprep.subr.bf16.mxu0 0
      %1484 = vmatpush1.bf16.msra.mxu0 0
      %1485 = vmatprep.subr.bf16.mxu0 0
      %1486 = vmatpush1.bf16.msra.mxu0 0
      %1487 = vmatprep.subr.bf16.mxu0 0
      %1488 = vmatpush1.bf16.msra.mxu0 0
      %1489 = vmatprep.subr.bf16.mxu0 0
      %1490 = vmatpush1.bf16.msra.mxu0 0
      %1491 = vmatprep.subr.bf16.mxu0 0
      %1492 = vmatpush1.bf16.msra.mxu0 0
      %1493 = vmatprep.subr.bf16.mxu0 0
      %1494 = vmatpush1.bf16.msra.mxu0 0
      %1495 = vmatprep.subr.bf16.mxu0 0
      %1496 = vmatpush1.bf16.msra.mxu0 0
      %1497 = vmatprep.subr.bf16.mxu0 0
      %1498 = vmatpush1.bf16.msra.mxu0 0
      %1499 = vmatprep.mubr.bf16.mxu0 0
      %1500 = vmatmul.mubr.bf16.gmra.mrb[0].mxu0 %v1453
      %v1501 = vpop.f32.mrb[0].mxu0
      %v1502 = vadd.f32 %v1400, %v1501
      %v1503 = vpop.f32.mrb[0].mxu0
      %v1504 = vadd.f32 %v1400, %v1503
      %v1505 = vpop.f32.mrb[0].mxu0
      %v1506 = vpop.f32.mrb[0].mxu0
      %1507 = vdwg.mxu0
      %1508 = vmatprep.subr.bf16.mxu0 %v1435
      %1509 = vmatpush1.bf16.msra.mxu0 %v1434
      %1510 = vmatprep.subr.bf16.mxu0 %v1439
      %1511 = vmatpush1.bf16.msra.mxu0 %v1438
      %1512 = vmatprep.subr.bf16.mxu0 %v1465
      %1513 = vmatpush1.bf16.msra.mxu0 %v1462
      %1514 = vmatprep.subr.bf16.mxu0 0
      %1515 = vmatpush1.bf16.msra.mxu0 0
      %1516 = vmatprep.subr.bf16.mxu0 0
      %1517 = vmatpush1.bf16.msra.mxu0 0
      %1518 = vmatprep.subr.bf16.mxu0 0
      %1519 = vmatpush1.bf16.msra.mxu0 0
      %1520 = vmatprep.subr.bf16.mxu0 0
      %1521 = vmatpush1.bf16.msra.mxu0 0
      %1522 = vmatprep.subr.bf16.mxu0 0
      %1523 = vmatpush1.bf16.msra.mxu0 0
      %1524 = vmatprep.subr.bf16.mxu0 0
      %1525 = vmatpush1.bf16.msra.mxu0 0
      %1526 = vmatprep.subr.bf16.mxu0 0
      %1527 = vmatpush1.bf16.msra.mxu0 0
      %1528 = vmatprep.subr.bf16.mxu0 0
      %1529 = vmatpush1.bf16.msra.mxu0 0
      %1530 = vmatprep.subr.bf16.mxu0 0
      %1531 = vmatpush1.bf16.msra.mxu0 0
      %1532 = vmatprep.subr.bf16.mxu0 0
      %1533 = vmatpush1.bf16.msra.mxu0 0
      %1534 = vmatprep.subr.bf16.mxu0 0
      %1535 = vmatpush1.bf16.msra.mxu0 0
      %1536 = vmatprep.subr.bf16.mxu0 0
      %1537 = vmatpush1.bf16.msra.mxu0 0
      %1538 = vmatprep.subr.bf16.mxu0 0
      %1539 = vmatpush1.bf16.msra.mxu0 0
      %1540 = vmatprep.mubr.bf16.mxu0 0
      %1541 = vmatmul.mubr.bf16.gmra.mrb[0].mxu0 %v1453
      %v1542 = vpop.f32.mrb[0].mxu0
      %v1543 = vadd.f32 %v1400, %v1542
      %v1544 = vpop.f32.mrb[0].mxu0
      %v1545 = vadd.f32 %v1400, %v1544
      %v1546 = vpop.f32.mrb[0].mxu0
      %v1547 = vpop.f32.mrb[0].mxu0
      %1548 = vdwg.mxu0
      %v1549 = vmul.f32 %v1502, 0.1
      %v1550 = vmul.f32 %v1504, 0.1
      %v1551 = vadd.f32 %v386, %v1549
      %v1552 = vadd.f32 %v388, %v1550
      %1553 = vst [vmem:[%s285] sm:$0xff] %v1551
      %1554 = vst [vmem:[%s285 + $0x8] sm:$0xff] %v1552
      %v1555 = vmul.f32 %v1543, 0.1
      %v1556 = vmul.f32 %v1545, 0.1
      %v1557 = vadd.f32 %v457, %v1555
      %v1558 = vadd.f32 %v459, %v1556
      %s1559 = scalar_lea.vmem %s285, 16
      %1560 = vst [vmem:[%s1559] sm:$0xff] %v1557
      %1561 = vst [vmem:[%s1559 + $0x8] sm:$0xff] %v1558
      %s1562 = smul.u32 2, %s18
      %p1563 = scmp.lt.s32.totalorder %s1562, 3
      %s1564 = scalar_select %p1563, %s1562, 3
      %s1565 = smul.addr %s1564, 2
      %s1566 = smul.addr %s1565, 8
      %s1567 = scalar_lea.vmem %s7, %s1566
      // Predicated region
      $region49: #{resnet_block_style_svd.1} parent=47 // pred_check
        %p1568 = pneg %p188
      $region50: #{resnet_block_style_svd.1} parent=47 // pred_check_branch
        %1570 = sbr.rel (%p1568) target = $region52
      $region51: #{resnet_block_style_svd.1} parent=47 // pred_region
        %s1571 = smul.u32 2, %s18
      $region52: #{resnet_block_style_svd.1} parent=47 // pred_fallthru
        _
    $region48: #{resnet_block_style_svd.1} parent=5 // pred_fallthru
      _
    %p1572 = scmp.le.s32.totalorder 2, %s13
    // Predicated region
    $region53: #{resnet_block_style_svd.1} parent=5 // pred_check
      %p1573 = pneg %p1572
    $region54: #{resnet_block_style_svd.1} parent=5 // pred_check_branch
      %1575 = sbr.rel (%p1573) target = $region56
    $region55: #{resnet_block_style_svd.1} parent=5 // pred_region
      %s1576 = ssub.s32 %s13, 2
      // Predicated region
      $region57: #{resnet_block_style_svd.1} parent=55 // pred_check
        %p1577 = pneg %p194
      $region58: #{resnet_block_style_svd.1} parent=55 // pred_check_branch
        %1579 = sbr.rel (%p1577) target = $region60
      $region59: #{resnet_block_style_svd.1} parent=55 // pred_region
        %s1580 = smul.u32 2, %s19
        %p1581 = scmp.lt.s32.totalorder %s1580, 3
        %s1582 = scalar_select %p1581, %s1580, 3
        %s1583 = smul.addr %s1582, 2
        %s1584 = smul.addr %s1583, 8
        %s1585 = scalar_lea.vmem %s7, %s1584
      $region60: #{resnet_block_style_svd.1} parent=55 // pred_fallthru
        _
    $region56: #{resnet_block_style_svd.1} parent=5 // pred_fallthru
      _
  $region6: #{resnet_block_style_svd.1} parent=0 // loop_footer
    %s17 = sadd.s32 1, %s13
  $region7: #{resnet_block_style_svd.1} parent=0 // loop_footer_branch
    %12 = sbr.rel target = $region3
  $region8: #{resnet_block_style_svd.1} parent=0 // loop_exit
    _

</llo_original>
